<compile_context>
chip_gen: v5e
topology: v5e:2x2
jax: 0.10.0
libtpu: 0.0.40
codegen_flags: <defaults>
</compile_context>

<pallas_src>
import functools

import jax
import jax.numpy as jnp
from jax import lax
from jax.experimental import pallas as pl
from jax.experimental.pallas import tpu as pltpu

M_MOMENTUM = 0.999
T_MOCO = 0.07
INV_T = 1.0 / T_MOCO
EPS = 1e-12          # F.normalize default eps
EPS2 = EPS * EPS

# Scoped-VMEM ceiling that also fits v7x (64 MiB physical); live-buffer budget
# used for tile selection is kept below it with headroom.  On v5e/v6e (128 MiB)
# these could be raised further (generation-aware tuning left as a knob).
_VMEM_LIMIT = 32 * 1024 * 1024
_TILE_BUDGET = 20 * 1024 * 1024


# ----------------------------------------------------------------------------
# helpers: padding + VMEM-budget-aware tile selection
# ----------------------------------------------------------------------------
def _round_up(x, m):
    return ((x + m - 1) // m) * m


def _pad2(x, rows, cols):
    r, c = x.shape
    if r == rows and c == cols:
        return x
    return jnp.pad(x, ((0, rows - r), (0, cols - c)))


def prepare_params(params, d_pad, f_pad, c_pad):
    """Pad encoder params ONCE (persistent pre-padded state)."""
    wf, bf, wc, bc = params
    return (_pad2(wf, d_pad, f_pad), _pad2(bf, 1, f_pad),
            _pad2(wc, f_pad, c_pad), _pad2(bc, 1, c_pad))


def prepare_memory(features_mem, f_pad):
    """Pad the (F, K) memory bank ONCE and store it as bf16 (HBM-bound kernel)."""
    _, k = features_mem.shape
    k_pad = _round_up(k, 128)
    return _pad2(features_mem, f_pad, k_pad).astype(jnp.bfloat16)


def _choose_encoder_tiles(n_pad, d_pad, f_pad, c_pad):
    """Largest (tm, tk) under the live-VMEM budget; bigger tm cuts Wf re-reads,
    bigger tk cuts grid steps (~0.35 us fixed overhead each)."""
    const = 4 * (2 * f_pad + 2 * f_pad * c_pad + 2 * c_pad)       # bf, Wc, bc
    for tm in (256, 128, 64, 32, 16, 8):
        if n_pad % tm:
            continue
        for tk in (2048, 1024, 512, 256, 128):
            if d_pad % tk:
                continue
            live = const + 4 * (2 * tm * tk + 2 * tk * f_pad      # x, Wf (dbl-buf)
                                + 2 * tm * f_pad + 2 * tm * c_pad # feats, logits
                                + 2 * tm * f_pad)                 # q_norm
            if live <= _TILE_BUDGET:
                return tm, tk
    return 8, 128


def _choose_moco_tile(n_pad, f_pad, k_pad):
    for tkk in (8192, 4096, 2048, 1024, 512, 256, 128):
        if k_pad % tkk:
            continue
        live = (2 * f_pad * tkk * 2          # mem tile, bf16, double-buffered
                + 2 * n_pad * tkk * 4        # output tile, double-buffered
                + 2 * 2 * n_pad * f_pad * 4) # q_norm / k_norm resident blocks
        if live <= _TILE_BUDGET:
            return tkk
    return 128


# ----------------------------------------------------------------------------
# Kernel 1: query encoder
#   feats = x @ Wf + bf ; logits = feats @ Wc + bc ; q = normalize(feats)
#   grid = (rows, D_in reduction); accumulate straight into the resident feats
#   output block; finalize fuses bias add, classifier matmul and normalization.
# ----------------------------------------------------------------------------
def _encoder_kernel(x_ref, wf_ref, bf_ref, wc_ref, bc_ref,
                    feats_ref, logits_ref, qn_ref):
    k = pl.program_id(1)

    @pl.when(k == 0)
    def _():
        feats_ref[...] = jnp.zeros_like(feats_ref)

    feats_ref[...] += jnp.dot(x_ref[...].astype(jnp.bfloat16),
                              wf_ref[...].astype(jnp.bfloat16),
                              preferred_element_type=jnp.float32)

    @pl.when(k == pl.num_programs(1) - 1)
    def _():
        feats = feats_ref[...] + bf_ref[...]
        feats_ref[...] = feats
        logits_ref[...] = (
            jnp.dot(feats.astype(jnp.bfloat16), wc_ref[...].astype(jnp.bfloat16),
                    preferred_element_type=jnp.float32) + bc_ref[...])
        # F.normalize(x, dim=1): x / max(||x||, eps) == x * rsqrt(max(||x||^2, eps^2))
        qn_ref[...] = feats * lax.rsqrt(
            jnp.maximum(jnp.sum(feats * feats, axis=1, keepdims=True), EPS2))


def encoder_forward(x_p, params_p):
    wf, bf, wc, bc = params_p
    n_pad, d_pad = x_p.shape
    f_pad = wf.shape[1]
    c_pad = wc.shape[1]
    tm, tk = _choose_encoder_tiles(n_pad, d_pad, f_pad, c_pad)
    grid = (n_pad // tm, d_pad // tk)
    return pl.pallas_call(
        _encoder_kernel,
        out_shape=(
            jax.ShapeDtypeStruct((n_pad, f_pad), jnp.float32),   # feats_q
            jax.ShapeDtypeStruct((n_pad, c_pad), jnp.float32),   # logits_q
            jax.ShapeDtypeStruct((n_pad, f_pad), jnp.float32),   # q (normalized)
        ),
        grid=grid,
        in_specs=[
            pl.BlockSpec((tm, tk), lambda m, k: (m, k)),         # x
            pl.BlockSpec((tk, f_pad), lambda m, k: (k, 0)),      # Wf (streamed)
            pl.BlockSpec((1, f_pad), lambda m, k: (0, 0)),       # bf
            pl.BlockSpec((f_pad, c_pad), lambda m, k: (0, 0)),   # Wc
            pl.BlockSpec((1, c_pad), lambda m, k: (0, 0)),       # bc
        ],
        out_specs=(
            pl.BlockSpec((tm, f_pad), lambda m, k: (m, 0)),
            pl.BlockSpec((tm, c_pad), lambda m, k: (m, 0)),
            pl.BlockSpec((tm, f_pad), lambda m, k: (m, 0)),
        ),
        compiler_params=pltpu.CompilerParams(
            dimension_semantics=("parallel", "arbitrary"),
            vmem_limit_bytes=_VMEM_LIMIT,
        ),
    )(x_p, wf, bf, wc, bc)


# ----------------------------------------------------------------------------
# Kernel 2: key encoder (EMA is done in the wrapper).  Only the NORMALIZED
# key features are needed downstream (momentum logits are discarded by the
# reference forward), so this kernel emits normalize(x @ nWf + nbf) directly.
# Row axis is "parallel" (megacore-shardable on v7x).
# ----------------------------------------------------------------------------
def _key_encoder_kernel(x_ref, wf_ref, bf_ref, kn_ref):
    k = pl.program_id(1)

    @pl.when(k == 0)
    def _():
        kn_ref[...] = jnp.zeros_like(kn_ref)

    kn_ref[...] += jnp.dot(x_ref[...].astype(jnp.bfloat16),
                           wf_ref[...].astype(jnp.bfloat16),
                           preferred_element_type=jnp.float32)

    @pl.when(k == pl.num_programs(1) - 1)
    def _():
        f = kn_ref[...] + bf_ref[...]
        kn_ref[...] = f * lax.rsqrt(
            jnp.maximum(jnp.sum(f * f, axis=1, keepdims=True), EPS2))


def key_encoder_forward(x_p, wf_p, bf_p):
    n_pad, d_pad = x_p.shape
    f_pad = wf_p.shape[1]
    tm, tk = _choose_encoder_tiles(n_pad, d_pad, f_pad, 0)
    grid = (n_pad // tm, d_pad // tk)
    return pl.pallas_call(
        _key_encoder_kernel,
        out_shape=jax.ShapeDtypeStruct((n_pad, f_pad), jnp.float32),
        grid=grid,
        in_specs=[
            pl.BlockSpec((tm, tk), lambda m, k: (m, k)),
            pl.BlockSpec((tk, f_pad), lambda m, k: (k, 0)),
            pl.BlockSpec((1, f_pad), lambda m, k: (0, 0)),
        ],
        out_specs=pl.BlockSpec((tm, f_pad), lambda m, k: (m, 0)),
        compiler_params=pltpu.CompilerParams(
            dimension_semantics=("parallel", "arbitrary"),
            vmem_limit_bytes=_VMEM_LIMIT,
        ),
    )(x_p, wf_p, bf_p)


# ----------------------------------------------------------------------------
# Kernel 3: MoCo instance logits (memory bank tiled over K, "parallel" axis).
#   Block 0 of the packed output holds l_pos broadcast across the tile (lane
#   tkk-1 is the meaningful one); blocks 1.. hold l_neg tiles.  Every grid
#   step writes exactly its own output block => megacore-safe.
#   logits_ins = packed[:, tkk-1 : tkk+K]  (single slice, no concat).
# ----------------------------------------------------------------------------
def _moco_kernel(qn_ref, kn_ref, mem_ref, out_ref):
    j = pl.program_id(0)

    @pl.when(j == 0)
    def _():
        lpos = jnp.sum(qn_ref[...] * kn_ref[...], axis=1, keepdims=True) * INV_T
        out_ref[...] = jnp.broadcast_to(lpos, out_ref.shape)

    @pl.when(j > 0)
    def _():
        out_ref[...] = (
            jnp.dot(qn_ref[...].astype(jnp.bfloat16), mem_ref[...],
                    preferred_element_type=jnp.float32) * INV_T)


def moco_logits(qn_p, kn_p, mem_p):
    n_pad, f_pad = qn_p.shape
    k_pad = mem_p.shape[1]
    tkk = _choose_moco_tile(n_pad, f_pad, k_pad)
    grid = (1 + k_pad // tkk,)
    packed = pl.pallas_call(
        _moco_kernel,
        out_shape=jax.ShapeDtypeStruct((n_pad, tkk + k_pad), jnp.float32),
        grid=grid,
        in_specs=[
            pl.BlockSpec((n_pad, f_pad), lambda j: (0, 0)),                    # q (resident)
            pl.BlockSpec((n_pad, f_pad), lambda j: (0, 0)),                    # k (resident)
            pl.BlockSpec((f_pad, tkk), lambda j: (0, jnp.maximum(j - 1, 0))),  # bank tile (bf16)
        ],
        out_specs=pl.BlockSpec((n_pad, tkk), lambda j: (0, j)),
        compiler_params=pltpu.CompilerParams(
            dimension_semantics=("parallel",),    # no prologue/scratch => shardable
            vmem_limit_bytes=_VMEM_LIMIT,
        ),
    )(qn_p, kn_p, mem_p)
    return packed, tkk


# ----------------------------------------------------------------------------
# AdaMoCo forward (functional: new momentum params are returned PADDED so the
# caller can feed them straight back as persistent pre-padded state).
# ----------------------------------------------------------------------------
@functools.partial(jax.jit, static_argnames=("dims", "cls_only"))
def adamoco_forward(im_q, im_k, params_q_p, params_k_p, mem_p, dims, cls_only=False):
    f_dim, c_dim, K = dims
    n = im_q.shape[0]
    xq = im_q.reshape(n, -1)
    d_pad = params_q_p[0].shape[0]
    n_pad = _round_up(n, 8)

    xq_p = _pad2(xq, n_pad, d_pad)
    feats_q_p, logits_q_p, qn_p = encoder_forward(xq_p, params_q_p)
    feats_q = feats_q_p[:n, :f_dim]
    logits_q = logits_q_p[:n, :c_dim]
    if cls_only:
        return feats_q, logits_q

    # Momentum (EMA) update of the key-encoder params: trivial elementwise XLA
    # pass (unfused from the matmul kernel so the kernel never re-reads /
    # re-writes the weights per row block).  Padding regions stay zero.
    params_k_new_p = tuple(pk * M_MOMENTUM + pq * (1.0 - M_MOMENTUM)
                           for pq, pk in zip(params_q_p, params_k_p))

    xk_p = _pad2(im_k.reshape(n, -1), n_pad, d_pad)
    kn_p = key_encoder_forward(xk_p, params_k_new_p[0], params_k_new_p[1])

    packed, tkk = moco_logits(qn_p, kn_p, mem_p)
    logits_ins = packed[:n, tkk - 1: tkk + K]     # [l_pos | l_neg] single slice
    k_out = kn_p[:n, :f_dim]
    return feats_q, logits_q, logits_ins, k_out, params_k_new_p


# ----------------------------------------------------------------------------
# Deterministic parameter construction + plain-XLA reference for checking
# ----------------------------------------------------------------------------
def init_encoder_params(key, d_in, features_length, num_classes):
    k1, k2, k3, k4 = jax.random.split(key, 4)
    wf = jax.random.normal(k1, (d_in, features_length), jnp.float32) * 0.02
    bf = jax.random.normal(k2, (1, features_length), jnp.float32) * 0.02
    wc = jax.random.normal(k3, (features_length, num_classes), jnp.float32) * 0.02
    bc = jax.random.normal(k4, (1, num_classes), jnp.float32) * 0.02
    return (wf, bf, wc, bc)


def _reference_forward(im_q, im_k, params_q, params_k, mem):
    hp = lax.Precision.HIGHEST
    n = im_q.shape[0]
    wf, bf, wc, bc = params_q
    xq = im_q.reshape(n, -1)
    feats_q = jnp.dot(xq, wf, precision=hp) + bf
    logits_q = jnp.dot(feats_q, wc, precision=hp) + bc
    new_k = tuple(pk * M_MOMENTUM + pq * (1.0 - M_MOMENTUM)
                  for pq, pk in zip(params_q, params_k))
    nwf, nbf, _, _ = new_k
    feats_k = jnp.dot(im_k.reshape(n, -1), nwf, precision=hp) + nbf
    q = feats_q / jnp.maximum(
        jnp.sqrt(jnp.sum(feats_q * feats_q, axis=1, keepdims=True)), EPS)
    kk = feats_k / jnp.maximum(
        jnp.sqrt(jnp.sum(feats_k * feats_k, axis=1, keepdims=True)), EPS)
    l_pos = jnp.sum(q * kk, axis=1, keepdims=True)
    l_neg = jnp.dot(q, mem, precision=hp)
    logits_ins = jnp.concatenate([l_pos, l_neg], axis=1) / T_MOCO
    return feats_q, logits_q, logits_ins, kk, new_k


def _assert_close(name, a, b, atol, rtol):
    if not bool(jnp.allclose(a, b, atol=atol, rtol=rtol)):
        err = float(jnp.max(jnp.abs(a - b)))
        raise AssertionError(f"{name} mismatch (max abs err {err})")


if __name__ == "__main__":
    # Small shapes consistent with the module
    N, C, H, W = 2, 4, 16, 16
    features_length = 32
    num_classes = 4
    dataset_length = 64
    temporal_length = 5
    K = min(16384, dataset_length)   # 64

    key = jax.random.PRNGKey(0)
    k_imq, k_imk, k_pq, k_pk, k_feat = jax.random.split(key, 5)

    im_q = jax.random.normal(k_imq, (N, C, H, W), jnp.float32)
    im_k = jax.random.normal(k_imk, (N, C, H, W), jnp.float32)

    d_in = C * H * W
    params_q = init_encoder_params(k_pq, d_in, features_length, num_classes)
    params_k = init_encoder_params(k_pk, d_in, features_length, num_classes)

    # register_buffer('features', randn(features_length, K)); F.normalize(dim=0)
    features_mem = jax.random.normal(k_feat, (features_length, K), jnp.float32)
    features_mem = features_mem / jnp.maximum(
        jnp.sqrt(jnp.sum(features_mem * features_mem, axis=0, keepdims=True)), EPS)
    # TODO(synk): labels/idxs/mem_labels/real_labels buffers and update_memory()
    # (queue-pointer scatter bookkeeping) are training state, not part of forward().

    # ---- persistent pre-padded state (built ONCE, outside the jitted forward) ----
    d_pad = _round_up(d_in, 128)
    f_pad = _round_up(features_length, 128)
    c_pad = _round_up(num_classes, 128)
    params_q_p = prepare_params(params_q, d_pad, f_pad, c_pad)
    params_k_p = prepare_params(params_k, d_pad, f_pad, c_pad)
    mem_p = prepare_memory(features_mem, f_pad)        # bf16, padded to 128 lanes

    dims = (features_length, num_classes, K)
    out = adamoco_forward(im_q, im_k, params_q_p, params_k_p, mem_p, dims)
    feats_q, logits_q, logits_ins, k_out, new_params_k_p = jax.block_until_ready(out)

    assert feats_q.shape == (N, features_length)
    assert logits_q.shape == (N, num_classes)
    assert logits_ins.shape == (N, 1 + K)
    assert k_out.shape == (N, features_length)

    # Numerical check against a plain-XLA f32 reference.  Kernel uses bf16 MXU
    # operands + bf16 memory bank (per perf review), so tolerances account for
    # bf16 drift; logits_ins is additionally scaled by 1/T = 14.3.
    r_fq, r_lq, r_li, r_k, r_pk = _reference_forward(
        im_q, im_k, params_q, params_k, features_mem)
    _assert_close("feats_q", feats_q, r_fq, atol=3e-2, rtol=3e-2)
    _assert_close("logits_q", logits_q, r_lq, atol=3e-2, rtol=3e-2)
    _assert_close("logits_ins", logits_ins, r_li, atol=1e-1, rtol=5e-2)
    _assert_close("k", k_out, r_k, atol=3e-2, rtol=3e-2)
    new_k_cmp = (new_params_k_p[0][:d_in, :features_length],
                 new_params_k_p[1][:, :features_length],
                 new_params_k_p[2][:features_length, :num_classes],
                 new_params_k_p[3][:, :num_classes])
    for a, b, nm in zip(new_k_cmp, r_pk, ("wf", "bf", "wc", "bc")):
        _assert_close(f"new_params_k.{nm}", a, b, atol=1e-5, rtol=1e-5)

    # cls_only path
    f_only, l_only = adamoco_forward(im_q, None, params_q_p, params_k_p,
                                     mem_p, dims, cls_only=True)
    jax.block_until_ready((f_only, l_only))
    assert f_only.shape == (N, features_length)
    assert l_only.shape == (N, num_classes)

    print("KERNEL_OK")
</pallas_src>

<mosaic_0001>
module attributes {stable_mosaic.version = 11 : i64} {
  func.func @_key_encoder_kernel(%arg0: i32, %arg1: i32, %arg2: memref<8x1024xf32, #tpu.memory_space<vmem>>, %arg3: memref<1024x128xf32, #tpu.memory_space<vmem>>, %arg4: memref<1x128xf32, #tpu.memory_space<vmem>>, %arg5: memref<8x128xf32, #tpu.memory_space<vmem>>) attributes {dimension_semantics = [#tpu.dimension_semantics<parallel>, #tpu.dimension_semantics<arbitrary>], iteration_bounds = array<i64: 1, 1>, scalar_prefetch = 0 : i64, scratch_operands = 0 : i64, tpu.core_type = #tpu.core_type<tc>, window_params = [{transform_indices = @transform_0, window_bounds = array<i64: 8, 1024>}, {transform_indices = @transform_1, window_bounds = array<i64: 1024, 128>}, {pipeline_mode = #tpu.pipeline_mode<synchronous>, transform_indices = @transform_2, window_bounds = array<i64: 1, 128>}, {transform_indices = @transform_3, window_bounds = array<i64: 8, 128>}]} {
    %c0_i32 = arith.constant 0 : i32
    %0 = arith.cmpi eq, %arg1, %c0_i32 : i32
    %1 = arith.extui %0 : i1 to i32
    %c0_i32_0 = arith.constant 0 : i32
    %2 = arith.cmpi ne, %1, %c0_i32_0 : i32
    scf.if %2 {
      %cst_10 = arith.constant 0.000000e+00 : f32
      %14 = vector.broadcast %cst_10 : f32 to vector<8x128xf32>
      %c0_11 = arith.constant 0 : index
      %c0_12 = arith.constant 0 : index
      %15 = vector.load %arg5[%c0_11, %c0_12] : memref<8x128xf32, #tpu.memory_space<vmem>>, vector<8x128xf32>
      tpu.vector_store %arg5[%c0_11, %c0_12], %14 {strides = array<i32>} : memref<8x128xf32, #tpu.memory_space<vmem>>, vector<8x128xf32>,
    } else {
    }
    %c0 = arith.constant 0 : index
    %c0_1 = arith.constant 0 : index
    %3 = vector.load %arg5[%c0, %c0_1] : memref<8x128xf32, #tpu.memory_space<vmem>>, vector<8x128xf32>
    %c0_2 = arith.constant 0 : index
    %c0_3 = arith.constant 0 : index
    %4 = vector.load %arg2[%c0_2, %c0_3] : memref<8x1024xf32, #tpu.memory_space<vmem>>, vector<8x1024xf32>
    %5 = arith.truncf %4 : vector<8x1024xf32> to vector<8x1024xbf16>
    %c0_4 = arith.constant 0 : index
    %c0_5 = arith.constant 0 : index
    %6 = vector.load %arg3[%c0_4, %c0_5] : memref<1024x128xf32, #tpu.memory_space<vmem>>, vector<1024x128xf32>
    %7 = arith.truncf %6 : vector<1024x128xf32> to vector<1024x128xbf16>
    %cst = arith.constant dense<0.000000e+00> : vector<8x128xf32>
    %8 = tpu.matmul %5, %7, %cst {dimension_numbers = #tpu.dot_dimension_numbers<[1], [0], [0], [1], [0, 0, 1, 1], [], []>} : vector<8x1024xbf16>, vector<1024x128xbf16>, vector<8x128xf32> -> vector<8x128xf32>
    %9 = arith.addf %3, %8 : vector<8x128xf32>
    %c0_6 = arith.constant 0 : index
    %c0_7 = arith.constant 0 : index
    %10 = vector.load %arg5[%c0_6, %c0_7] : memref<8x128xf32, #tpu.memory_space<vmem>>, vector<8x128xf32>
    tpu.vector_store %arg5[%c0_6, %c0_7], %9 {strides = array<i32>} : memref<8x128xf32, #tpu.memory_space<vmem>>, vector<8x128xf32>,
    %c0_i32_8 = arith.constant 0 : i32
    %11 = arith.cmpi eq, %arg1, %c0_i32_8 : i32
    %12 = arith.extui %11 : i1 to i32
    %c0_i32_9 = arith.constant 0 : i32
    %13 = arith.cmpi ne, %12, %c0_i32_9 : i32
    scf.if %13 {
      %c0_10 = arith.constant 0 : index
      %c0_11 = arith.constant 0 : index
      %14 = vector.load %arg5[%c0_10, %c0_11] : memref<8x128xf32, #tpu.memory_space<vmem>>, vector<8x128xf32>
      %c0_12 = arith.constant 0 : index
      %c0_13 = arith.constant 0 : index
      %15 = vector.load %arg4[%c0_12, %c0_13] : memref<1x128xf32, #tpu.memory_space<vmem>>, vector<1x128xf32>
      %16 = vector.broadcast %15 : vector<1x128xf32> to vector<8x128xf32>
      %17 = arith.addf %14, %16 : vector<8x128xf32>
      %18 = arith.mulf %17, %17 : vector<8x128xf32>
      %cst_14 = arith.constant dense<0.000000e+00> : vector<8xf32>
      %19 = vector.multi_reduction <add>, %18, %cst_14 [1] : vector<8x128xf32> to vector<8xf32>
      %20 = vector.shape_cast %19 : vector<8xf32> to vector<8x1xf32>
      %cst_15 = arith.constant 1.000000e-24 : f32
      %21 = vector.broadcast %cst_15 : f32 to vector<8x1xf32>
      %22 = arith.maximumf %20, %21 : vector<8x1xf32>
      %23 = math.rsqrt %22 : vector<8x1xf32>
      %24 = vector.broadcast %23 : vector<8x1xf32> to vector<8x128xf32>
      %25 = arith.mulf %17, %24 : vector<8x128xf32>
      %c0_16 = arith.constant 0 : index
      %c0_17 = arith.constant 0 : index
      %26 = vector.load %arg5[%c0_16, %c0_17] : memref<8x128xf32, #tpu.memory_space<vmem>>, vector<8x128xf32>
      tpu.vector_store %arg5[%c0_16, %c0_17], %25 {strides = array<i32>} : memref<8x128xf32, #tpu.memory_space<vmem>>, vector<8x128xf32>,
    } else {
    }
    return
  }
  func.func @transform_0(%arg0: i32, %arg1: i32) -> (i32, i32) {
    %c0_i32 = arith.constant 0 : i32
    return %arg0, %arg1 : i32, i32
  }
  func.func @transform_1(%arg0: i32, %arg1: i32) -> (i32, i32) {
    %c0_i32 = arith.constant 0 : i32
    %c0_i32_0 = arith.constant 0 : i32
    return %arg1, %c0_i32 : i32, i32
  }
  func.func @transform_2(%arg0: i32, %arg1: i32) -> (i32, i32) {
    %c0_i32 = arith.constant 0 : i32
    %c0_i32_0 = arith.constant 0 : i32
    %c0_i32_1 = arith.constant 0 : i32
    return %c0_i32, %c0_i32_0 : i32, i32
  }
  func.func @transform_3(%arg0: i32, %arg1: i32) -> (i32, i32) {
    %c0_i32 = arith.constant 0 : i32
    %c0_i32_0 = arith.constant 0 : i32
    return %arg0, %c0_i32 : i32, i32
  }
}

module attributes {stable_mosaic.version = 11 : i64} {
  func.func @_encoder_kernel(%arg0: i32, %arg1: i32, %arg2: memref<8x1024xf32, #tpu.memory_space<vmem>>, %arg3: memref<1024x128xf32, #tpu.memory_space<vmem>>, %arg4: memref<1x128xf32, #tpu.memory_space<vmem>>, %arg5: memref<128x128xf32, #tpu.memory_space<vmem>>, %arg6: memref<1x128xf32, #tpu.memory_space<vmem>>, %arg7: memref<8x128xf32, #tpu.memory_space<vmem>>, %arg8: memref<8x128xf32, #tpu.memory_space<vmem>>, %arg9: memref<8x128xf32, #tpu.memory_space<vmem>>) attributes {dimension_semantics = [#tpu.dimension_semantics<parallel>, #tpu.dimension_semantics<arbitrary>], iteration_bounds = array<i64: 1, 1>, scalar_prefetch = 0 : i64, scratch_operands = 0 : i64, tpu.core_type = #tpu.core_type<tc>, window_params = [{transform_indices = @transform_0, window_bounds = array<i64: 8, 1024>}, {transform_indices = @transform_1, window_bounds = array<i64: 1024, 128>}, {pipeline_mode = #tpu.pipeline_mode<synchronous>, transform_indices = @transform_2, window_bounds = array<i64: 1, 128>}, {pipeline_mode = #tpu.pipeline_mode<synchronous>, transform_indices = @transform_3, window_bounds = array<i64: 128, 128>}, {pipeline_mode = #tpu.pipeline_mode<synchronous>, transform_indices = @transform_4, window_bounds = array<i64: 1, 128>}, {transform_indices = @transform_5, window_bounds = array<i64: 8, 128>}, {transform_indices = @transform_6, window_bounds = array<i64: 8, 128>}, {transform_indices = @transform_7, window_bounds = array<i64: 8, 128>}]} {
    %c0_i32 = arith.constant 0 : i32
    %0 = arith.cmpi eq, %arg1, %c0_i32 : i32
    %1 = arith.extui %0 : i1 to i32
    %c0_i32_0 = arith.constant 0 : i32
    %2 = arith.cmpi ne, %1, %c0_i32_0 : i32
    scf.if %2 {
      %cst_10 = arith.constant 0.000000e+00 : f32
      %14 = vector.broadcast %cst_10 : f32 to vector<8x128xf32>
      %c0_11 = arith.constant 0 : index
      %c0_12 = arith.constant 0 : index
      %15 = vector.load %arg7[%c0_11, %c0_12] : memref<8x128xf32, #tpu.memory_space<vmem>>, vector<8x128xf32>
      tpu.vector_store %arg7[%c0_11, %c0_12], %14 {strides = array<i32>} : memref<8x128xf32, #tpu.memory_space<vmem>>, vector<8x128xf32>,
    } else {
    }
    %c0 = arith.constant 0 : index
    %c0_1 = arith.constant 0 : index
    %3 = vector.load %arg7[%c0, %c0_1] : memref<8x128xf32, #tpu.memory_space<vmem>>, vector<8x128xf32>
    %c0_2 = arith.constant 0 : index
    %c0_3 = arith.constant 0 : index
    %4 = vector.load %arg2[%c0_2, %c0_3] : memref<8x1024xf32, #tpu.memory_space<vmem>>, vector<8x1024xf32>
    %5 = arith.truncf %4 : vector<8x1024xf32> to vector<8x1024xbf16>
    %c0_4 = arith.constant 0 : index
    %c0_5 = arith.constant 0 : index
    %6 = vector.load %arg3[%c0_4, %c0_5] : memref<1024x128xf32, #tpu.memory_space<vmem>>, vector<1024x128xf32>
    %7 = arith.truncf %6 : vector<1024x128xf32> to vector<1024x128xbf16>
    %cst = arith.constant dense<0.000000e+00> : vector<8x128xf32>
    %8 = tpu.matmul %5, %7, %cst {dimension_numbers = #tpu.dot_dimension_numbers<[1], [0], [0], [1], [0, 0, 1, 1], [], []>} : vector<8x1024xbf16>, vector<1024x128xbf16>, vector<8x128xf32> -> vector<8x128xf32>
    %9 = arith.addf %3, %8 : vector<8x128xf32>
    %c0_6 = arith.constant 0 : index
    %c0_7 = arith.constant 0 : index
    %10 = vector.load %arg7[%c0_6, %c0_7] : memref<8x128xf32, #tpu.memory_space<vmem>>, vector<8x128xf32>
    tpu.vector_store %arg7[%c0_6, %c0_7], %9 {strides = array<i32>} : memref<8x128xf32, #tpu.memory_space<vmem>>, vector<8x128xf32>,
    %c0_i32_8 = arith.constant 0 : i32
    %11 = arith.cmpi eq, %arg1, %c0_i32_8 : i32
    %12 = arith.extui %11 : i1 to i32
    %c0_i32_9 = arith.constant 0 : i32
    %13 = arith.cmpi ne, %12, %c0_i32_9 : i32
    scf.if %13 {
      %c0_10 = arith.constant 0 : index
      %c0_11 = arith.constant 0 : index
      %14 = vector.load %arg7[%c0_10, %c0_11] : memref<8x128xf32, #tpu.memory_space<vmem>>, vector<8x128xf32>
      %c0_12 = arith.constant 0 : index
      %c0_13 = arith.constant 0 : index
      %15 = vector.load %arg4[%c0_12, %c0_13] : memref<1x128xf32, #tpu.memory_space<vmem>>, vector<1x128xf32>
      %16 = vector.broadcast %15 : vector<1x128xf32> to vector<8x128xf32>
      %17 = arith.addf %14, %16 : vector<8x128xf32>
      %c0_14 = arith.constant 0 : index
      %c0_15 = arith.constant 0 : index
      %18 = vector.load %arg7[%c0_14, %c0_15] : memref<8x128xf32, #tpu.memory_space<vmem>>, vector<8x128xf32>
      tpu.vector_store %arg7[%c0_14, %c0_15], %17 {strides = array<i32>} : memref<8x128xf32, #tpu.memory_space<vmem>>, vector<8x128xf32>,
      %19 = arith.truncf %17 : vector<8x128xf32> to vector<8x128xbf16>
      %c0_16 = arith.constant 0 : index
      %c0_17 = arith.constant 0 : index
      %20 = vector.load %arg5[%c0_16, %c0_17] : memref<128x128xf32, #tpu.memory_space<vmem>>, vector<128x128xf32>
      %21 = arith.truncf %20 : vector<128x128xf32> to vector<128x128xbf16>
      %cst_18 = arith.constant dense<0.000000e+00> : vector<8x128xf32>
      %22 = tpu.matmul %19, %21, %cst_18 {dimension_numbers = #tpu.dot_dimension_numbers<[1], [0], [0], [1], [0, 0, 1, 1], [], []>} : vector<8x128xbf16>, vector<128x128xbf16>, vector<8x128xf32> -> vector<8x128xf32>
      %c0_19 = arith.constant 0 : index
      %c0_20 = arith.constant 0 : index
      %23 = vector.load %arg6[%c0_19, %c0_20] : memref<1x128xf32, #tpu.memory_space<vmem>>, vector<1x128xf32>
      %24 = vector.broadcast %23 : vector<1x128xf32> to vector<8x128xf32>
      %25 = arith.addf %22, %24 : vector<8x128xf32>
      %c0_21 = arith.constant 0 : index
      %c0_22 = arith.constant 0 : index
      %26 = vector.load %arg8[%c0_21, %c0_22] : memref<8x128xf32, #tpu.memory_space<vmem>>, vector<8x128xf32>
      tpu.vector_store %arg8[%c0_21, %c0_22], %25 {strides = array<i32>} : memref<8x128xf32, #tpu.memory_space<vmem>>, vector<8x128xf32>,
      %27 = arith.mulf %17, %17 : vector<8x128xf32>
      %cst_23 = arith.constant dense<0.000000e+00> : vector<8xf32>
      %28 = vector.multi_reduction <add>, %27, %cst_23 [1] : vector<8x128xf32> to vector<8xf32>
      %29 = vector.shape_cast %28 : vector<8xf32> to vector<8x1xf32>
      %cst_24 = arith.constant 1.000000e-24 : f32
      %30 = vector.broadcast %cst_24 : f32 to vector<8x1xf32>
      %31 = arith.maximumf %29, %30 : vector<8x1xf32>
      %32 = math.rsqrt %31 : vector<8x1xf32>
      %33 = vector.broadcast %32 : vector<8x1xf32> to vector<8x128xf32>
      %34 = arith.mulf %17, %33 : vector<8x128xf32>
      %c0_25 = arith.constant 0 : index
      %c0_26 = arith.constant 0 : index
      %35 = vector.load %arg9[%c0_25, %c0_26] : memref<8x128xf32, #tpu.memory_space<vmem>>, vector<8x128xf32>
      tpu.vector_store %arg9[%c0_25, %c0_26], %34 {strides = array<i32>} : memref<8x128xf32, #tpu.memory_space<vmem>>, vector<8x128xf32>,
    } else {
    }
    return
  }
  func.func @transform_0(%arg0: i32, %arg1: i32) -> (i32, i32) {
    %c0_i32 = arith.constant 0 : i32
    return %arg0, %arg1 : i32, i32
  }
  func.func @transform_1(%arg0: i32, %arg1: i32) -> (i32, i32) {
    %c0_i32 = arith.constant 0 : i32
    %c0_i32_0 = arith.constant 0 : i32
    return %arg1, %c0_i32 : i32, i32
  }
  func.func @transform_2(%arg0: i32, %arg1: i32) -> (i32, i32) {
    %c0_i32 = arith.constant 0 : i32
    %c0_i32_0 = arith.constant 0 : i32
    %c0_i32_1 = arith.constant 0 : i32
    return %c0_i32, %c0_i32_0 : i32, i32
  }
  func.func @transform_3(%arg0: i32, %arg1: i32) -> (i32, i32) {
    %c0_i32 = arith.constant 0 : i32
    %c0_i32_0 = arith.constant 0 : i32
    %c0_i32_1 = arith.constant 0 : i32
    return %c0_i32, %c0_i32_0 : i32, i32
  }
  func.func @transform_4(%arg0: i32, %arg1: i32) -> (i32, i32) {
    %c0_i32 = arith.constant 0 : i32
    %c0_i32_0 = arith.constant 0 : i32
    %c0_i32_1 = arith.constant 0 : i32
    return %c0_i32, %c0_i32_0 : i32, i32
  }
  func.func @transform_5(%arg0: i32, %arg1: i32) -> (i32, i32) {
    %c0_i32 = arith.constant 0 : i32
    %c0_i32_0 = arith.constant 0 : i32
    return %arg0, %c0_i32 : i32, i32
  }
  func.func @transform_6(%arg0: i32, %arg1: i32) -> (i32, i32) {
    %c0_i32 = arith.constant 0 : i32
    %c0_i32_0 = arith.constant 0 : i32
    return %arg0, %c0_i32 : i32, i32
  }
  func.func @transform_7(%arg0: i32, %arg1: i32) -> (i32, i32) {
    %c0_i32 = arith.constant 0 : i32
    %c0_i32_0 = arith.constant 0 : i32
    return %arg0, %c0_i32 : i32, i32
  }
}

module attributes {stable_mosaic.version = 11 : i64} {
  func.func @_moco_kernel(%arg0: i32, %arg1: memref<8x128xf32, #tpu.memory_space<vmem>>, %arg2: memref<8x128xf32, #tpu.memory_space<vmem>>, %arg3: memref<128x128xbf16, #tpu.memory_space<vmem>>, %arg4: memref<8x128xf32, #tpu.memory_space<vmem>>) attributes {dimension_semantics = [#tpu.dimension_semantics<parallel>], iteration_bounds = array<i64: 2>, scalar_prefetch = 0 : i64, scratch_operands = 0 : i64, tpu.core_type = #tpu.core_type<tc>, window_params = [{pipeline_mode = #tpu.pipeline_mode<synchronous>, transform_indices = @transform_0, window_bounds = array<i64: 8, 128>}, {pipeline_mode = #tpu.pipeline_mode<synchronous>, transform_indices = @transform_1, window_bounds = array<i64: 8, 128>}, {transform_indices = @transform_2, window_bounds = array<i64: 128, 128>}, {transform_indices = @transform_3, window_bounds = array<i64: 8, 128>}]} {
    %c0_i32 = arith.constant 0 : i32
    %0 = arith.cmpi eq, %arg0, %c0_i32 : i32
    %1 = arith.extui %0 : i1 to i32
    %c0_i32_0 = arith.constant 0 : i32
    %2 = arith.cmpi ne, %1, %c0_i32_0 : i32
    scf.if %2 {
      %c0 = arith.constant 0 : index
      %c0_3 = arith.constant 0 : index
      %6 = vector.load %arg1[%c0, %c0_3] : memref<8x128xf32, #tpu.memory_space<vmem>>, vector<8x128xf32>
      %c0_4 = arith.constant 0 : index
      %c0_5 = arith.constant 0 : index
      %7 = vector.load %arg2[%c0_4, %c0_5] : memref<8x128xf32, #tpu.memory_space<vmem>>, vector<8x128xf32>
      %8 = arith.mulf %6, %7 : vector<8x128xf32>
      %cst = arith.constant dense<0.000000e+00> : vector<8xf32>
      %9 = vector.multi_reduction <add>, %8, %cst [1] : vector<8x128xf32> to vector<8xf32>
      %10 = vector.shape_cast %9 : vector<8xf32> to vector<8x1xf32>
      %cst_6 = arith.constant 14.2857141 : f32
      %11 = vector.broadcast %cst_6 : f32 to vector<8x1xf32>
      %12 = arith.mulf %10, %11 : vector<8x1xf32>
      %13 = vector.shape_cast %12 : vector<8x1xf32> to vector<8x1xf32>
      %14 = vector.broadcast %13 : vector<8x1xf32> to vector<8x128xf32>
      %c0_7 = arith.constant 0 : index
      %c0_8 = arith.constant 0 : index
      %15 = vector.load %arg4[%c0_7, %c0_8] : memref<8x128xf32, #tpu.memory_space<vmem>>, vector<8x128xf32>
      tpu.vector_store %arg4[%c0_7, %c0_8], %14 {strides = array<i32>} : memref<8x128xf32, #tpu.memory_space<vmem>>, vector<8x128xf32>,
    } else {
    }
    %c0_i32_1 = arith.constant 0 : i32
    %3 = arith.cmpi sgt, %arg0, %c0_i32_1 : i32
    %4 = arith.extui %3 : i1 to i32
    %c0_i32_2 = arith.constant 0 : i32
    %5 = arith.cmpi ne, %4, %c0_i32_2 : i32
    scf.if %5 {
      %c0 = arith.constant 0 : index
      %c0_3 = arith.constant 0 : index
      %6 = vector.load %arg1[%c0, %c0_3] : memref<8x128xf32, #tpu.memory_space<vmem>>, vector<8x128xf32>
      %7 = arith.truncf %6 : vector<8x128xf32> to vector<8x128xbf16>
      %c0_4 = arith.constant 0 : index
      %c0_5 = arith.constant 0 : index
      %8 = vector.load %arg3[%c0_4, %c0_5] : memref<128x128xbf16, #tpu.memory_space<vmem>>, vector<128x128xbf16>
      %cst = arith.constant dense<0.000000e+00> : vector<8x128xf32>
      %9 = tpu.matmul %7, %8, %cst {dimension_numbers = #tpu.dot_dimension_numbers<[1], [0], [0], [1], [0, 0, 1, 1], [], []>} : vector<8x128xbf16>, vector<128x128xbf16>, vector<8x128xf32> -> vector<8x128xf32>
      %cst_6 = arith.constant 14.2857141 : f32
      %10 = vector.broadcast %cst_6 : f32 to vector<8x128xf32>
      %11 = arith.mulf %9, %10 : vector<8x128xf32>
      %c0_7 = arith.constant 0 : index
      %c0_8 = arith.constant 0 : index
      %12 = vector.load %arg4[%c0_7, %c0_8] : memref<8x128xf32, #tpu.memory_space<vmem>>, vector<8x128xf32>
      tpu.vector_store %arg4[%c0_7, %c0_8], %11 {strides = array<i32>} : memref<8x128xf32, #tpu.memory_space<vmem>>, vector<8x128xf32>,
    } else {
    }
    return
  }
  func.func @transform_0(%arg0: i32) -> (i32, i32) {
    %c0_i32 = arith.constant 0 : i32
    %c0_i32_0 = arith.constant 0 : i32
    %c0_i32_1 = arith.constant 0 : i32
    return %c0_i32, %c0_i32_0 : i32, i32
  }
  func.func @transform_1(%arg0: i32) -> (i32, i32) {
    %c0_i32 = arith.constant 0 : i32
    %c0_i32_0 = arith.constant 0 : i32
    %c0_i32_1 = arith.constant 0 : i32
    return %c0_i32, %c0_i32_0 : i32, i32
  }
  func.func @transform_2(%arg0: i32) -> (i32, i32) {
    %c1_i32 = arith.constant 1 : i32
    %0 = arith.subi %arg0, %c1_i32 : i32
    %c0_i32 = arith.constant 0 : i32
    %1 = arith.maxsi %0, %c0_i32 : i32
    %c0_i32_0 = arith.constant 0 : i32
    %c0_i32_1 = arith.constant 0 : i32
    return %c0_i32_0, %1 : i32, i32
  }
  func.func @transform_3(%arg0: i32) -> (i32, i32) {
    %c0_i32 = arith.constant 0 : i32
    %c0_i32_0 = arith.constant 0 : i32
    return %c0_i32, %arg0 : i32, i32
  }
}

</mosaic_0001>

<llo_original>
// kernel: adamoco_forward.5
$region0: #{adamoco_forward.5}
  #allocation0 [shape = 'u32[]', space=smem, size = 0x4, offset = 0x4, fixed_abs, tag = 'smem constant byte address 0x4 - core index']
  #allocation1 [shape = 'u32[72,128]{1,0:T(1,128)}', space=vmem, size = 0x9000, scoped, tag = 'internal scratch']
  %s0 = inlined_call_operand.vmem [shape: f32[8,128], index: 0, kind: input, shape index: {}]
  %s1 = inlined_call_operand.vmem [shape: f32[8,128], index: 1, kind: input, shape index: {}]
  %s2 = inlined_call_operand.vmem [shape: bf16[128,128], index: 2, kind: input, shape index: {}]
  %s3 = inlined_call_operand.vmem [shape: f32[8,256], index: 3, kind: output, shape index: {}]
  %s4 = sld [smem:[#allocation0]]
  $region53: #{adamoco_forward.5} parent=0
    _
  %s6 = ssub.s32 1, %s4
  %s7 = scalar_select 0, %s6, %s4
  loop: start=0, step=1, limit=4
  $region2: #{adamoco_forward.5} parent=0 // loop_pre_header
    _
  $region3: #{adamoco_forward.5} parent=0 // loop_header
    %s9 = sphi 0, %s13
    %p10 = scmp.ge.s32.totalorder %s9, 4
    %s17 = sphi 0, %s17
    %s19 = sphi 0, %s17
    %s20 = sphi 0, %s19
    %s34 = sphi 0, %s20
    %s38 = sphi 0, %s38
    %s40 = sphi 0, %s38
    %s41 = sphi 0, %s40
    %s55 = sphi 0, %s41
    %s67 = sphi 0, %s69
    %s70 = sphi 0, %s67
    %s71 = sphi 0, %s70
    %s87 = sphi 0, %s71
    %s93 = sphi 0, %s95
    %s96 = sphi 0, %s93
    %s97 = sphi 0, %s96
    %s113 = sphi 0, %s97
  $region4: #{adamoco_forward.5} parent=0 // loop_header_branch
    %12 = sbr.rel (%p10) target = $region8
  $region5: #{adamoco_forward.5} parent=0 // loop_body
    %s14 = ssub.s32 %s9, 1
    %s15 = ssub.s32 %s9, 2
    %s16 = sadd.s32 %s9, 1
    %s18 = sadd.s32 %s17, 1
    %p21 = scmp.eq.s32.totalorder %s9, 1
    %p22 = scmp.ne.s32.totalorder %s17, %s19
    %p23 = scmp.eq.s32.totalorder %s9, 0
    %p24 = por %p22, %p23
    %p25 = scmp.ne.s32.totalorder %s17, %s19
    %p26 = scmp.eq.s32.totalorder %s14, 1
    %p27 = por %p25, %p26
    %p28 = scmp.ne.s32.totalorder %s19, %s20
    %p29 = scmp.eq.s32.totalorder %s14, 0
    %p30 = por %p28, %p29
    %p31 = scmp.ne.s32.totalorder %s19, %s20
    %p32 = scmp.eq.s32.totalorder %s15, 1
    %p33 = por %p31, %p32
    %p35 = scmp.ne.s32.totalorder %s20, %s34
    %p36 = scmp.eq.s32.totalorder %s15, 0
    %p37 = por %p35, %p36
    %s39 = sadd.s32 %s38, 1
    %p42 = scmp.eq.s32.totalorder %s9, 1
    %p43 = scmp.ne.s32.totalorder %s38, %s40
    %p44 = scmp.eq.s32.totalorder %s9, 0
    %p45 = por %p43, %p44
    %p46 = scmp.ne.s32.totalorder %s38, %s40
    %p47 = scmp.eq.s32.totalorder %s14, 1
    %p48 = por %p46, %p47
    %p49 = scmp.ne.s32.totalorder %s40, %s41
    %p50 = scmp.eq.s32.totalorder %s14, 0
    %p51 = por %p49, %p50
    %p52 = scmp.ne.s32.totalorder %s40, %s41
    %p53 = scmp.eq.s32.totalorder %s15, 1
    %p54 = por %p52, %p53
    %p56 = scmp.ne.s32.totalorder %s41, %s55
    %p57 = scmp.eq.s32.totalorder %s15, 0
    %p58 = por %p56, %p57
    %s59 = ssub.s32 %s9, 1
    %p60 = scmp.gt.s32.totalorder %s59, 0
    %s61 = scalar_select %p60, %s59, 0
    %s62 = ssub.s32 %s16, 1
    %p63 = scmp.gt.s32.totalorder %s62, 0
    %s64 = scalar_select %p63, %s62, 0
    %s65 = ssub.s32 %s61, %s64
    %p66 = scmp.eq.s32.totalorder %s65, 0
    %s68 = sadd.s32 %s67, 1
    %s69 = scalar_select %p66, %s67, %s68
    %p72 = pneg %p66
    %p73 = scmp.eq.s32.totalorder %s9, 1
    %p74 = por %p72, %p73
    %p75 = scmp.ne.s32.totalorder %s67, %s70
    %p76 = scmp.eq.s32.totalorder %s9, 0
    %p77 = por %p75, %p76
    %p78 = scmp.ne.s32.totalorder %s67, %s70
    %p79 = scmp.eq.s32.totalorder %s14, 1
    %p80 = por %p78, %p79
    %p81 = scmp.ne.s32.totalorder %s70, %s71
    %p82 = scmp.eq.s32.totalorder %s14, 0
    %p83 = por %p81, %p82
    %p84 = scmp.ne.s32.totalorder %s70, %s71
    %p85 = scmp.eq.s32.totalorder %s15, 1
    %p86 = por %p84, %p85
    %p88 = scmp.ne.s32.totalorder %s71, %s87
    %p89 = scmp.eq.s32.totalorder %s15, 0
    %p90 = por %p88, %p89
    %s91 = ssub.s32 %s9, %s16
    %p92 = scmp.eq.s32.totalorder %s91, 0
    %s94 = sadd.s32 %s93, 1
    %s95 = scalar_select %p92, %s93, %s94
    %p98 = pneg %p92
    %p99 = scmp.eq.s32.totalorder %s9, 1
    %p100 = por %p98, %p99
    %p101 = scmp.ne.s32.totalorder %s93, %s96
    %p102 = scmp.eq.s32.totalorder %s9, 0
    %p103 = por %p101, %p102
    %p104 = scmp.ne.s32.totalorder %s93, %s96
    %p105 = scmp.eq.s32.totalorder %s14, 1
    %p106 = por %p104, %p105
    %p107 = scmp.ne.s32.totalorder %s96, %s97
    %p108 = scmp.eq.s32.totalorder %s14, 0
    %p109 = por %p107, %p108
    %p110 = scmp.ne.s32.totalorder %s96, %s97
    %p111 = scmp.eq.s32.totalorder %s15, 1
    %p112 = por %p110, %p111
    %p114 = scmp.ne.s32.totalorder %s97, %s113
    %p115 = scmp.eq.s32.totalorder %s15, 0
    %p116 = por %p114, %p115
    %p117 = scmp.le.s32.totalorder 1, %s9
    %p118 = scmp.lt.s32.totalorder %s9, 3
    %p119 = pnand %p117, %p118
    %p120 = pneg %p119
    // Predicated region
    $region9: #{adamoco_forward.5} parent=5 // pred_check
      _
    $region10: #{adamoco_forward.5} parent=5 // pred_check_branch
      %122 = sbr.rel (%p119) target = $region12
    $region11: #{adamoco_forward.5} parent=5 // pred_region
      %s123 = ssub.s32 %s9, 1
      // Predicated region
      $region13: #{adamoco_forward.5} parent=11 // pred_check
        %p124 = pneg %p30
      $region14: #{adamoco_forward.5} parent=11 // pred_check_branch
        %126 = sbr.rel (%p124) target = $region16
      $region15: #{adamoco_forward.5} parent=11 // pred_region
        _
      $region16: #{adamoco_forward.5} parent=11 // pred_fallthru
        _
      // Predicated region
      $region17: #{adamoco_forward.5} parent=11 // pred_check
        %p127 = pneg %p51
      $region18: #{adamoco_forward.5} parent=11 // pred_check_branch
        %129 = sbr.rel (%p127) target = $region20
      $region19: #{adamoco_forward.5} parent=11 // pred_region
        _
      $region20: #{adamoco_forward.5} parent=11 // pred_fallthru
        _
    $region12: #{adamoco_forward.5} parent=5 // pred_fallthru
      _
    %p130 = scmp.lt.s32.totalorder %s9, 2
    // Predicated region
    $region21: #{adamoco_forward.5} parent=5 // pred_check
      %p131 = pneg %p130
    $region22: #{adamoco_forward.5} parent=5 // pred_check_branch
      %133 = sbr.rel (%p131) target = $region24
    $region23: #{adamoco_forward.5} parent=5 // pred_region
      // Predicated region
      $region25: #{adamoco_forward.5} parent=23 // pred_check
        %p134 = pneg %p77
      $region26: #{adamoco_forward.5} parent=23 // pred_check_branch
        %136 = sbr.rel (%p134) target = $region28
      $region27: #{adamoco_forward.5} parent=23 // pred_region
        %s137 = ssub.s32 %s9, 1
        %p138 = scmp.gt.s32.totalorder %s137, 0
        %s139 = scalar_select %p138, %s137, 0
        %p140 = scmp.lt.s32.totalorder %s139, 0
        %s141 = scalar_select %p140, %s139, 0
        %s142 = smul.addr %s141, 4
        %s143 = scalar_lea.vmem %s2, %s142
        %s144 = ssub.s32 %s9, 1
        %p145 = scmp.gt.s32.totalorder %s144, 0
        %s146 = scalar_select %p145, %s144, 0
      $region28: #{adamoco_forward.5} parent=23 // pred_fallthru
        _
    $region24: #{adamoco_forward.5} parent=5 // pred_fallthru
      _
    %p147 = scmp.le.s32.totalorder 1, %s9
    %p148 = scmp.lt.s32.totalorder %s9, 3
    %p149 = pnand %p147, %p148
    %p150 = pneg %p149
    // Predicated region
    $region29: #{adamoco_forward.5} parent=5 // pred_check
      _
    $region30: #{adamoco_forward.5} parent=5 // pred_check_branch
      %152 = sbr.rel (%p149) target = $region32
    $region31: #{adamoco_forward.5} parent=5 // pred_region
      %s153 = ssub.s32 %s9, 1
      %p154 = pneg %p30
      %p155 = pneg %p27
      %p156 = pneg %p51
      %p157 = pneg %p48
      %s158 = ssub.s32 %s14, 1
      %p159 = scmp.gt.s32.totalorder %s158, 0
      %s160 = scalar_select %p159, %s158, 0
      %p161 = scmp.lt.s32.totalorder %s160, 0
      %s162 = scalar_select %p161, %s160, 0
      %s163 = smul.addr %s162, 4
      %s164 = scalar_lea.vmem %s2, %s163
      %p165 = pneg %p83
      %p166 = pneg %p80
      %p167 = pneg %p109
      %p168 = pneg %p106
      %p169 = scmp.lt.s32.totalorder %s14, 1
      %s170 = scalar_select %p169, %s14, 1
      %s171 = smul.addr %s170, 8
      %s172 = scalar_lea.vmem %s3, %s171
      %s173 = ssub.s32 %s14, 1
      %p174 = scmp.gt.s32.totalorder %s173, 0
      %s175 = scalar_select %p174, %s173, 0
      %p176 = scmp.lt.s32.totalorder %s175, 0
      %s177 = scalar_select %p176, %s175, 0
      %s178 = smul.addr %s177, 4
      %s179 = scalar_lea.vmem %s2, %s178
      %s180 = ssub.s32 %s14, 1
      %p181 = scmp.gt.s32.totalorder %s180, 0
      %s182 = scalar_select %p181, %s180, 0
      %p183 = scmp.lt.s32.totalorder %s14, 1
      %s184 = scalar_select %p183, %s14, 1
      %s185 = smul.addr %s184, 8
      %s186 = scalar_lea.vmem %s3, %s185
      %p187 = scmp.eq.s32.totalorder %s14, 0
      // Predicated region
      $region33: #{adamoco_forward.5} parent=31 // pred_check
        %p188 = pneg %p187
      $region34: #{adamoco_forward.5} parent=31 // pred_check_branch
        %190 = sbr.rel (%p188) target = $region36
      $region35: #{adamoco_forward.5} parent=31 // pred_region
        %v191 = vld [vmem:[%s0] sm:$0xff]
        %v192 = vld [vmem:[%s1] sm:$0xff]
        %v193 = vmul.f32 %v191, %v192
        %194 = vadd.xlane.f32.xlu0 %v193
        %v195 = vpop.xlane.xlu0 %194
        %v196 = vmul.f32 %v195, 14.285714
        %197 = vst [vmem:[%s186] sm:$0xff] %v196
      $region36: #{adamoco_forward.5} parent=31 // pred_fallthru
        _
      %p198 = scmp.gt.s32.totalorder %s14, 0
      // Predicated region
      $region37: #{adamoco_forward.5} parent=31 // pred_check
        %p199 = pneg %p198
      $region38: #{adamoco_forward.5} parent=31 // pred_check_branch
        %201 = sbr.rel (%p199) target = $region40
      $region39: #{adamoco_forward.5} parent=31 // pred_region
        %v202 = vld [vmem:[%s0] sm:$0xff]
        %v203 = vpack.c.bf16 %v202, %v202
        %v204 = vld [vmem:[%s179] sm:$0xf]
        %v205 = vld [vmem:[%s179 + $0x4] sm:$0xf]
        %v206 = vld [vmem:[%s179 + $0x8] sm:$0xf]
        %v207 = vld [vmem:[%s179 + $0xc] sm:$0xf]
        %v208 = vld [vmem:[%s179 + $0x10] sm:$0xf]
        %v209 = vld [vmem:[%s179 + $0x14] sm:$0xf]
        %v210 = vld [vmem:[%s179 + $0x18] sm:$0xf]
        %v211 = vld [vmem:[%s179 + $0x1c] sm:$0xf]
        %v212 = vld [vmem:[%s179 + $0x20] sm:$0xf]
        %v213 = vld [vmem:[%s179 + $0x24] sm:$0xf]
        %v214 = vld [vmem:[%s179 + $0x28] sm:$0xf]
        %v215 = vld [vmem:[%s179 + $0x2c] sm:$0xf]
        %v216 = vld [vmem:[%s179 + $0x30] sm:$0xf]
        %v217 = vld [vmem:[%s179 + $0x34] sm:$0xf]
        %v218 = vld [vmem:[%s179 + $0x38] sm:$0xf]
        %v219 = vld [vmem:[%s179 + $0x3c] sm:$0xf]
        %v236 = vunpack.c.l.b16 %v204
        %v237 = vunpack.c.l.b16 %v205
        %v238 = vunpack.c.l.b16 %v206
        %v239 = vunpack.c.l.b16 %v207
        %v240 = vunpack.c.l.b16 %v208
        %v241 = vunpack.c.l.b16 %v209
        %v242 = vunpack.c.l.b16 %v210
        %v243 = vunpack.c.l.b16 %v211
        %v244 = vunpack.c.l.b16 %v212
        %v245 = vunpack.c.l.b16 %v213
        %v246 = vunpack.c.l.b16 %v214
        %v247 = vunpack.c.l.b16 %v215
        %v248 = vunpack.c.l.b16 %v216
        %v249 = vunpack.c.l.b16 %v217
        %v250 = vunpack.c.l.b16 %v218
        %v251 = vunpack.c.l.b16 %v219
        %v252 = vpack.c.b16 %v237, %v236
        %v253 = vpack.c.b16 %v239, %v238
        %v254 = vpack.c.b16 %v241, %v240
        %v255 = vpack.c.b16 %v243, %v242
        %v256 = vpack.c.b16 %v245, %v244
        %v257 = vpack.c.b16 %v247, %v246
        %v258 = vpack.c.b16 %v249, %v248
        %v259 = vpack.c.b16 %v251, %v250
        %268 = vmatpush.bf16.msra.mxu0 %v259
        %269 = vmatpush.bf16.msra.mxu0 %v258
        %270 = vmatpush.bf16.msra.mxu0 %v257
        %271 = vmatpush.bf16.msra.mxu0 %v256
        %272 = vmatpush.bf16.msra.mxu0 %v255
        %273 = vmatpush.bf16.msra.mxu0 %v254
        %274 = vmatpush.bf16.msra.mxu0 %v253
        %275 = vmatpush.bf16.msra.mxu0 %v252
        %276 = vmatmul.bf16.gmra.mxu0 %v203
        %v277 = vpop.f32.mrf.mxu0
        %v278 = vadd.f32 0.0, %v277
        %v279 = vpop.f32.mrf.mxu0
        %280 = vdwg.mxu0
        %v281 = vmul.f32 %v278, 14.285714
        %282 = vst [vmem:[%s186] sm:$0xff] %v281
      $region40: #{adamoco_forward.5} parent=31 // pred_fallthru
        _
      %p283 = scmp.lt.s32.totalorder %s14, 1
      %s284 = scalar_select %p283, %s14, 1
      %s285 = smul.addr %s284, 8
      %s286 = scalar_lea.vmem %s3, %s285
      // Predicated region
      $region41: #{adamoco_forward.5} parent=31 // pred_check
        %p287 = pneg %p106
      $region42: #{adamoco_forward.5} parent=31 // pred_check_branch
        %289 = sbr.rel (%p287) target = $region44
      $region43: #{adamoco_forward.5} parent=31 // pred_region
        _
      $region44: #{adamoco_forward.5} parent=31 // pred_fallthru
        _
    $region32: #{adamoco_forward.5} parent=5 // pred_fallthru
      _
    %p290 = scmp.le.s32.totalorder 2, %s9
    // Predicated region
    $region45: #{adamoco_forward.5} parent=5 // pred_check
      %p291 = pneg %p290
    $region46: #{adamoco_forward.5} parent=5 // pred_check_branch
      %293 = sbr.rel (%p291) target = $region48
    $region47: #{adamoco_forward.5} parent=5 // pred_region
      %s294 = ssub.s32 %s9, 2
      // Predicated region
      $region49: #{adamoco_forward.5} parent=47 // pred_check
        %p295 = pneg %p112
      $region50: #{adamoco_forward.5} parent=47 // pred_check_branch
        %297 = sbr.rel (%p295) target = $region52
      $region51: #{adamoco_forward.5} parent=47 // pred_region
        %p298 = scmp.lt.s32.totalorder %s15, 1
        %s299 = scalar_select %p298, %s15, 1
        %s300 = smul.addr %s299, 8
        %s301 = scalar_lea.vmem %s3, %s300
      $region52: #{adamoco_forward.5} parent=47 // pred_fallthru
        _
    $region48: #{adamoco_forward.5} parent=5 // pred_fallthru
      _
  $region6: #{adamoco_forward.5} parent=0 // loop_footer
    %s13 = sadd.s32 1, %s9
  $region7: #{adamoco_forward.5} parent=0 // loop_footer_branch
    %8 = sbr.rel target = $region3
  $region8: #{adamoco_forward.5} parent=0 // loop_exit
    _

// kernel: adamoco_forward.4
$region0: #{adamoco_forward.4}
  #allocation0 [shape = 'u32[]', space=smem, size = 0x4, offset = 0x4, fixed_abs, tag = 'smem constant byte address 0x4 - core index']
  #allocation1 [shape = 'u32[72,128]{1,0:T(1,128)}', space=vmem, size = 0x9000, scoped, tag = 'internal scratch']
  %s0 = inlined_call_operand.vmem [shape: f32[8,1024], index: 0, kind: input, shape index: {}]
  %s1 = inlined_call_operand.vmem [shape: f32[1024,128], index: 1, kind: input, shape index: {}]
  %s2 = inlined_call_operand.vmem [shape: f32[1,128], index: 2, kind: input, shape index: {}]
  %s3 = inlined_call_operand.vmem [shape: f32[8,128], index: 3, kind: output, shape index: {}]
  %s4 = sld [smem:[#allocation0]]
  $region30: #{adamoco_forward.4} parent=0
    _
  %s6 = ssub.s32 1, %s4
  %s7 = scalar_select 0, %s6, %s4
  // Predicated region
  $region2: #{adamoco_forward.4} parent=0 // pred_check
    _
  $region3: #{adamoco_forward.4} parent=0 // pred_check_branch
    %9 = sbr.rel (0) target = $region5
  $region4: #{adamoco_forward.4} parent=0 // pred_region
    _
  $region5: #{adamoco_forward.4} parent=0 // pred_fallthru
    _
  // Predicated region
  $region6: #{adamoco_forward.4} parent=0 // pred_check
    _
  $region7: #{adamoco_forward.4} parent=0 // pred_check_branch
    %11 = sbr.rel (0) target = $region9
  $region8: #{adamoco_forward.4} parent=0 // pred_region
    _
  $region9: #{adamoco_forward.4} parent=0 // pred_fallthru
    _
  // Predicated region
  $region10: #{adamoco_forward.4} parent=0 // pred_check
    _
  $region11: #{adamoco_forward.4} parent=0 // pred_check_branch
    %13 = sbr.rel (0) target = $region13
  $region12: #{adamoco_forward.4} parent=0 // pred_region
    _
  $region13: #{adamoco_forward.4} parent=0 // pred_fallthru
    _
  %p14 = scmp.eq.s32.totalorder 0, 0
  // Predicated region
  $region14: #{adamoco_forward.4} parent=0 // pred_check
    %p15 = pneg %p14
  $region15: #{adamoco_forward.4} parent=0 // pred_check_branch
    %17 = sbr.rel (%p15) target = $region17
  $region16: #{adamoco_forward.4} parent=0 // pred_region
    %18 = vst [vmem:[%s3] sm:$0xff] 0.0
  $region17: #{adamoco_forward.4} parent=0 // pred_fallthru
    _
  %v19 = vld [vmem:[%s3] sm:$0xff]
  %v20 = vld [vmem:[%s0] sm:$0xff]
  %v21 = vld [vmem:[%s0 + $0x8] sm:$0xff]
  %v22 = vld [vmem:[%s0 + $0x10] sm:$0xff]
  %v23 = vld [vmem:[%s0 + $0x18] sm:$0xff]
  %v24 = vld [vmem:[%s0 + $0x20] sm:$0xff]
  %v25 = vld [vmem:[%s0 + $0x28] sm:$0xff]
  %v26 = vld [vmem:[%s0 + $0x30] sm:$0xff]
  %v27 = vld [vmem:[%s0 + $0x38] sm:$0xff]
  %v28 = vpack.c.bf16 %v20, %v20
  %v29 = vpack.c.bf16 %v21, %v21
  %v30 = vpack.c.bf16 %v22, %v22
  %v31 = vpack.c.bf16 %v23, %v23
  %v32 = vpack.c.bf16 %v24, %v24
  %v33 = vpack.c.bf16 %v25, %v25
  %v34 = vpack.c.bf16 %v26, %v26
  %v35 = vpack.c.bf16 %v27, %v27
  %v36 = vld [vmem:[%s1] sm:$0xff]
  %v37 = vld [vmem:[%s1 + $0x8] sm:$0xff]
  %v38 = vld [vmem:[%s1 + $0x10] sm:$0xff]
  %v39 = vld [vmem:[%s1 + $0x18] sm:$0xff]
  %v40 = vld [vmem:[%s1 + $0x20] sm:$0xff]
  %v41 = vld [vmem:[%s1 + $0x28] sm:$0xff]
  %v42 = vld [vmem:[%s1 + $0x30] sm:$0xff]
  %v43 = vld [vmem:[%s1 + $0x38] sm:$0xff]
  %v44 = vld [vmem:[%s1 + $0x40] sm:$0xff]
  %v45 = vld [vmem:[%s1 + $0x48] sm:$0xff]
  %v46 = vld [vmem:[%s1 + $0x50] sm:$0xff]
  %v47 = vld [vmem:[%s1 + $0x58] sm:$0xff]
  %v48 = vld [vmem:[%s1 + $0x60] sm:$0xff]
  %v49 = vld [vmem:[%s1 + $0x68] sm:$0xff]
  %v50 = vld [vmem:[%s1 + $0x70] sm:$0xff]
  %v51 = vld [vmem:[%s1 + $0x78] sm:$0xff]
  %v52 = vld [vmem:[%s1 + $0x80] sm:$0xff]
  %v53 = vld [vmem:[%s1 + $0x88] sm:$0xff]
  %v54 = vld [vmem:[%s1 + $0x90] sm:$0xff]
  %v55 = vld [vmem:[%s1 + $0x98] sm:$0xff]
  %v56 = vld [vmem:[%s1 + $0xa0] sm:$0xff]
  %v57 = vld [vmem:[%s1 + $0xa8] sm:$0xff]
  %v58 = vld [vmem:[%s1 + $0xb0] sm:$0xff]
  %v59 = vld [vmem:[%s1 + $0xb8] sm:$0xff]
  %v60 = vld [vmem:[%s1 + $0xc0] sm:$0xff]
  %v61 = vld [vmem:[%s1 + $0xc8] sm:$0xff]
  %v62 = vld [vmem:[%s1 + $0xd0] sm:$0xff]
  %v63 = vld [vmem:[%s1 + $0xd8] sm:$0xff]
  %v64 = vld [vmem:[%s1 + $0xe0] sm:$0xff]
  %v65 = vld [vmem:[%s1 + $0xe8] sm:$0xff]
  %v66 = vld [vmem:[%s1 + $0xf0] sm:$0xff]
  %v67 = vld [vmem:[%s1 + $0xf8] sm:$0xff]
  %v68 = vld [vmem:[%s1 + $0x100] sm:$0xff]
  %v69 = vld [vmem:[%s1 + $0x108] sm:$0xff]
  %v70 = vld [vmem:[%s1 + $0x110] sm:$0xff]
  %v71 = vld [vmem:[%s1 + $0x118] sm:$0xff]
  %v72 = vld [vmem:[%s1 + $0x120] sm:$0xff]
  %v73 = vld [vmem:[%s1 + $0x128] sm:$0xff]
  %v74 = vld [vmem:[%s1 + $0x130] sm:$0xff]
  %v75 = vld [vmem:[%s1 + $0x138] sm:$0xff]
  %v76 = vld [vmem:[%s1 + $0x140] sm:$0xff]
  %v77 = vld [vmem:[%s1 + $0x148] sm:$0xff]
  %v78 = vld [vmem:[%s1 + $0x150] sm:$0xff]
  %v79 = vld [vmem:[%s1 + $0x158] sm:$0xff]
  %v80 = vld [vmem:[%s1 + $0x160] sm:$0xff]
  %v81 = vld [vmem:[%s1 + $0x168] sm:$0xff]
  %v82 = vld [vmem:[%s1 + $0x170] sm:$0xff]
  %v83 = vld [vmem:[%s1 + $0x178] sm:$0xff]
  %v84 = vld [vmem:[%s1 + $0x180] sm:$0xff]
  %v85 = vld [vmem:[%s1 + $0x188] sm:$0xff]
  %v86 = vld [vmem:[%s1 + $0x190] sm:$0xff]
  %v87 = vld [vmem:[%s1 + $0x198] sm:$0xff]
  %v88 = vld [vmem:[%s1 + $0x1a0] sm:$0xff]
  %v89 = vld [vmem:[%s1 + $0x1a8] sm:$0xff]
  %v90 = vld [vmem:[%s1 + $0x1b0] sm:$0xff]
  %v91 = vld [vmem:[%s1 + $0x1b8] sm:$0xff]
  %v92 = vld [vmem:[%s1 + $0x1c0] sm:$0xff]
  %v93 = vld [vmem:[%s1 + $0x1c8] sm:$0xff]
  %v94 = vld [vmem:[%s1 + $0x1d0] sm:$0xff]
  %v95 = vld [vmem:[%s1 + $0x1d8] sm:$0xff]
  %v96 = vld [vmem:[%s1 + $0x1e0] sm:$0xff]
  %v97 = vld [vmem:[%s1 + $0x1e8] sm:$0xff]
  %v98 = vld [vmem:[%s1 + $0x1f0] sm:$0xff]
  %v99 = vld [vmem:[%s1 + $0x1f8] sm:$0xff]
  %v100 = vld [vmem:[%s1 + $0x200] sm:$0xff]
  %v101 = vld [vmem:[%s1 + $0x208] sm:$0xff]
  %v102 = vld [vmem:[%s1 + $0x210] sm:$0xff]
  %v103 = vld [vmem:[%s1 + $0x218] sm:$0xff]
  %v104 = vld [vmem:[%s1 + $0x220] sm:$0xff]
  %v105 = vld [vmem:[%s1 + $0x228] sm:$0xff]
  %v106 = vld [vmem:[%s1 + $0x230] sm:$0xff]
  %v107 = vld [vmem:[%s1 + $0x238] sm:$0xff]
  %v108 = vld [vmem:[%s1 + $0x240] sm:$0xff]
  %v109 = vld [vmem:[%s1 + $0x248] sm:$0xff]
  %v110 = vld [vmem:[%s1 + $0x250] sm:$0xff]
  %v111 = vld [vmem:[%s1 + $0x258] sm:$0xff]
  %v112 = vld [vmem:[%s1 + $0x260] sm:$0xff]
  %v113 = vld [vmem:[%s1 + $0x268] sm:$0xff]
  %v114 = vld [vmem:[%s1 + $0x270] sm:$0xff]
  %v115 = vld [vmem:[%s1 + $0x278] sm:$0xff]
  %v116 = vld [vmem:[%s1 + $0x280] sm:$0xff]
  %v117 = vld [vmem:[%s1 + $0x288] sm:$0xff]
  %v118 = vld [vmem:[%s1 + $0x290] sm:$0xff]
  %v119 = vld [vmem:[%s1 + $0x298] sm:$0xff]
  %v120 = vld [vmem:[%s1 + $0x2a0] sm:$0xff]
  %v121 = vld [vmem:[%s1 + $0x2a8] sm:$0xff]
  %v122 = vld [vmem:[%s1 + $0x2b0] sm:$0xff]
  %v123 = vld [vmem:[%s1 + $0x2b8] sm:$0xff]
  %v124 = vld [vmem:[%s1 + $0x2c0] sm:$0xff]
  %v125 = vld [vmem:[%s1 + $0x2c8] sm:$0xff]
  %v126 = vld [vmem:[%s1 + $0x2d0] sm:$0xff]
  %v127 = vld [vmem:[%s1 + $0x2d8] sm:$0xff]
  %v128 = vld [vmem:[%s1 + $0x2e0] sm:$0xff]
  %v129 = vld [vmem:[%s1 + $0x2e8] sm:$0xff]
  %v130 = vld [vmem:[%s1 + $0x2f0] sm:$0xff]
  %v131 = vld [vmem:[%s1 + $0x2f8] sm:$0xff]
  %v132 = vld [vmem:[%s1 + $0x300] sm:$0xff]
  %v133 = vld [vmem:[%s1 + $0x308] sm:$0xff]
  %v134 = vld [vmem:[%s1 + $0x310] sm:$0xff]
  %v135 = vld [vmem:[%s1 + $0x318] sm:$0xff]
  %v136 = vld [vmem:[%s1 + $0x320] sm:$0xff]
  %v137 = vld [vmem:[%s1 + $0x328] sm:$0xff]
  %v138 = vld [vmem:[%s1 + $0x330] sm:$0xff]
  %v139 = vld [vmem:[%s1 + $0x338] sm:$0xff]
  %v140 = vld [vmem:[%s1 + $0x340] sm:$0xff]
  %v141 = vld [vmem:[%s1 + $0x348] sm:$0xff]
  %v142 = vld [vmem:[%s1 + $0x350] sm:$0xff]
  %v143 = vld [vmem:[%s1 + $0x358] sm:$0xff]
  %v144 = vld [vmem:[%s1 + $0x360] sm:$0xff]
  %v145 = vld [vmem:[%s1 + $0x368] sm:$0xff]
  %v146 = vld [vmem:[%s1 + $0x370] sm:$0xff]
  %v147 = vld [vmem:[%s1 + $0x378] sm:$0xff]
  %v148 = vld [vmem:[%s1 + $0x380] sm:$0xff]
  %v149 = vld [vmem:[%s1 + $0x388] sm:$0xff]
  %v150 = vld [vmem:[%s1 + $0x390] sm:$0xff]
  %v151 = vld [vmem:[%s1 + $0x398] sm:$0xff]
  %v152 = vld [vmem:[%s1 + $0x3a0] sm:$0xff]
  %v153 = vld [vmem:[%s1 + $0x3a8] sm:$0xff]
  %v154 = vld [vmem:[%s1 + $0x3b0] sm:$0xff]
  %v155 = vld [vmem:[%s1 + $0x3b8] sm:$0xff]
  %v156 = vld [vmem:[%s1 + $0x3c0] sm:$0xff]
  %v157 = vld [vmem:[%s1 + $0x3c8] sm:$0xff]
  %v158 = vld [vmem:[%s1 + $0x3d0] sm:$0xff]
  %v159 = vld [vmem:[%s1 + $0x3d8] sm:$0xff]
  %v160 = vld [vmem:[%s1 + $0x3e0] sm:$0xff]
  %v161 = vld [vmem:[%s1 + $0x3e8] sm:$0xff]
  %v162 = vld [vmem:[%s1 + $0x3f0] sm:$0xff]
  %v163 = vld [vmem:[%s1 + $0x3f8] sm:$0xff]
  %v164 = vpack.c.bf16 %v37, %v36
  %v165 = vpack.c.bf16 %v39, %v38
  %v166 = vpack.c.bf16 %v41, %v40
  %v167 = vpack.c.bf16 %v43, %v42
  %v168 = vpack.c.bf16 %v45, %v44
  %v169 = vpack.c.bf16 %v47, %v46
  %v170 = vpack.c.bf16 %v49, %v48
  %v171 = vpack.c.bf16 %v51, %v50
  %v172 = vpack.c.bf16 %v53, %v52
  %v173 = vpack.c.bf16 %v55, %v54
  %v174 = vpack.c.bf16 %v57, %v56
  %v175 = vpack.c.bf16 %v59, %v58
  %v176 = vpack.c.bf16 %v61, %v60
  %v177 = vpack.c.bf16 %v63, %v62
  %v178 = vpack.c.bf16 %v65, %v64
  %v179 = vpack.c.bf16 %v67, %v66
  %v180 = vpack.c.bf16 %v69, %v68
  %v181 = vpack.c.bf16 %v71, %v70
  %v182 = vpack.c.bf16 %v73, %v72
  %v183 = vpack.c.bf16 %v75, %v74
  %v184 = vpack.c.bf16 %v77, %v76
  %v185 = vpack.c.bf16 %v79, %v78
  %v186 = vpack.c.bf16 %v81, %v80
  %v187 = vpack.c.bf16 %v83, %v82
  %v188 = vpack.c.bf16 %v85, %v84
  %v189 = vpack.c.bf16 %v87, %v86
  %v190 = vpack.c.bf16 %v89, %v88
  %v191 = vpack.c.bf16 %v91, %v90
  %v192 = vpack.c.bf16 %v93, %v92
  %v193 = vpack.c.bf16 %v95, %v94
  %v194 = vpack.c.bf16 %v97, %v96
  %v195 = vpack.c.bf16 %v99, %v98
  %v196 = vpack.c.bf16 %v101, %v100
  %v197 = vpack.c.bf16 %v103, %v102
  %v198 = vpack.c.bf16 %v105, %v104
  %v199 = vpack.c.bf16 %v107, %v106
  %v200 = vpack.c.bf16 %v109, %v108
  %v201 = vpack.c.bf16 %v111, %v110
  %v202 = vpack.c.bf16 %v113, %v112
  %v203 = vpack.c.bf16 %v115, %v114
  %v204 = vpack.c.bf16 %v117, %v116
  %v205 = vpack.c.bf16 %v119, %v118
  %v206 = vpack.c.bf16 %v121, %v120
  %v207 = vpack.c.bf16 %v123, %v122
  %v208 = vpack.c.bf16 %v125, %v124
  %v209 = vpack.c.bf16 %v127, %v126
  %v210 = vpack.c.bf16 %v129, %v128
  %v211 = vpack.c.bf16 %v131, %v130
  %v212 = vpack.c.bf16 %v133, %v132
  %v213 = vpack.c.bf16 %v135, %v134
  %v214 = vpack.c.bf16 %v137, %v136
  %v215 = vpack.c.bf16 %v139, %v138
  %v216 = vpack.c.bf16 %v141, %v140
  %v217 = vpack.c.bf16 %v143, %v142
  %v218 = vpack.c.bf16 %v145, %v144
  %v219 = vpack.c.bf16 %v147, %v146
  %v220 = vpack.c.bf16 %v149, %v148
  %v221 = vpack.c.bf16 %v151, %v150
  %v222 = vpack.c.bf16 %v153, %v152
  %v223 = vpack.c.bf16 %v155, %v154
  %v224 = vpack.c.bf16 %v157, %v156
  %v225 = vpack.c.bf16 %v159, %v158
  %v226 = vpack.c.bf16 %v161, %v160
  %v227 = vpack.c.bf16 %v163, %v162
  %228 = vmatpush.bf16.msra.mxu0 %v171
  %229 = vmatpush.bf16.msra.mxu0 %v170
  %230 = vmatpush.bf16.msra.mxu0 %v169
  %231 = vmatpush.bf16.msra.mxu0 %v168
  %232 = vmatpush.bf16.msra.mxu0 %v167
  %233 = vmatpush.bf16.msra.mxu0 %v166
  %234 = vmatpush.bf16.msra.mxu0 %v165
  %235 = vmatpush.bf16.msra.mxu0 %v164
  %236 = vmatmul.bf16.gmra.mxu0 %v28
  %v237 = vpop.f32.mrf.mxu0
  %v238 = vadd.f32 0.0, %v237
  %v239 = vpop.f32.mrf.mxu0
  %240 = vdwg.mxu0
  %241 = vmatpush.bf16.msra.mxu0 %v179
  %242 = vmatpush.bf16.msra.mxu0 %v178
  %243 = vmatpush.bf16.msra.mxu0 %v177
  %244 = vmatpush.bf16.msra.mxu0 %v176
  %245 = vmatpush.bf16.msra.mxu0 %v175
  %246 = vmatpush.bf16.msra.mxu0 %v174
  %247 = vmatpush.bf16.msra.mxu0 %v173
  %248 = vmatpush.bf16.msra.mxu0 %v172
  %249 = vmatmul.bf16.gmra.mxu0 %v29
  %v250 = vpop.f32.mrf.mxu0
  %v251 = vadd.f32 %v238, %v250
  %v252 = vpop.f32.mrf.mxu0
  %253 = vdwg.mxu0
  %254 = vmatpush.bf16.msra.mxu0 %v187
  %255 = vmatpush.bf16.msra.mxu0 %v186
  %256 = vmatpush.bf16.msra.mxu0 %v185
  %257 = vmatpush.bf16.msra.mxu0 %v184
  %258 = vmatpush.bf16.msra.mxu0 %v183
  %259 = vmatpush.bf16.msra.mxu0 %v182
  %260 = vmatpush.bf16.msra.mxu0 %v181
  %261 = vmatpush.bf16.msra.mxu0 %v180
  %262 = vmatmul.bf16.gmra.mxu0 %v30
  %v263 = vpop.f32.mrf.mxu0
  %v264 = vadd.f32 %v251, %v263
  %v265 = vpop.f32.mrf.mxu0
  %266 = vdwg.mxu0
  %267 = vmatpush.bf16.msra.mxu0 %v195
  %268 = vmatpush.bf16.msra.mxu0 %v194
  %269 = vmatpush.bf16.msra.mxu0 %v193
  %270 = vmatpush.bf16.msra.mxu0 %v192
  %271 = vmatpush.bf16.msra.mxu0 %v191
  %272 = vmatpush.bf16.msra.mxu0 %v190
  %273 = vmatpush.bf16.msra.mxu0 %v189
  %274 = vmatpush.bf16.msra.mxu0 %v188
  %275 = vmatmul.bf16.gmra.mxu0 %v31
  %v276 = vpop.f32.mrf.mxu0
  %v277 = vadd.f32 %v264, %v276
  %v278 = vpop.f32.mrf.mxu0
  %279 = vdwg.mxu0
  %280 = vmatpush.bf16.msra.mxu0 %v203
  %281 = vmatpush.bf16.msra.mxu0 %v202
  %282 = vmatpush.bf16.msra.mxu0 %v201
  %283 = vmatpush.bf16.msra.mxu0 %v200
  %284 = vmatpush.bf16.msra.mxu0 %v199
  %285 = vmatpush.bf16.msra.mxu0 %v198
  %286 = vmatpush.bf16.msra.mxu0 %v197
  %287 = vmatpush.bf16.msra.mxu0 %v196
  %288 = vmatmul.bf16.gmra.mxu0 %v32
  %v289 = vpop.f32.mrf.mxu0
  %v290 = vadd.f32 %v277, %v289
  %v291 = vpop.f32.mrf.mxu0
  %292 = vdwg.mxu0
  %293 = vmatpush.bf16.msra.mxu0 %v211
  %294 = vmatpush.bf16.msra.mxu0 %v210
  %295 = vmatpush.bf16.msra.mxu0 %v209
  %296 = vmatpush.bf16.msra.mxu0 %v208
  %297 = vmatpush.bf16.msra.mxu0 %v207
  %298 = vmatpush.bf16.msra.mxu0 %v206
  %299 = vmatpush.bf16.msra.mxu0 %v205
  %300 = vmatpush.bf16.msra.mxu0 %v204
  %301 = vmatmul.bf16.gmra.mxu0 %v33
  %v302 = vpop.f32.mrf.mxu0
  %v303 = vadd.f32 %v290, %v302
  %v304 = vpop.f32.mrf.mxu0
  %305 = vdwg.mxu0
  %306 = vmatpush.bf16.msra.mxu0 %v219
  %307 = vmatpush.bf16.msra.mxu0 %v218
  %308 = vmatpush.bf16.msra.mxu0 %v217
  %309 = vmatpush.bf16.msra.mxu0 %v216
  %310 = vmatpush.bf16.msra.mxu0 %v215
  %311 = vmatpush.bf16.msra.mxu0 %v214
  %312 = vmatpush.bf16.msra.mxu0 %v213
  %313 = vmatpush.bf16.msra.mxu0 %v212
  %314 = vmatmul.bf16.gmra.mxu0 %v34
  %v315 = vpop.f32.mrf.mxu0
  %v316 = vadd.f32 %v303, %v315
  %v317 = vpop.f32.mrf.mxu0
  %318 = vdwg.mxu0
  %319 = vmatpush.bf16.msra.mxu0 %v227
  %320 = vmatpush.bf16.msra.mxu0 %v226
  %321 = vmatpush.bf16.msra.mxu0 %v225
  %322 = vmatpush.bf16.msra.mxu0 %v224
  %323 = vmatpush.bf16.msra.mxu0 %v223
  %324 = vmatpush.bf16.msra.mxu0 %v222
  %325 = vmatpush.bf16.msra.mxu0 %v221
  %326 = vmatpush.bf16.msra.mxu0 %v220
  %327 = vmatmul.bf16.gmra.mxu0 %v35
  %v328 = vpop.f32.mrf.mxu0
  %v329 = vadd.f32 %v316, %v328
  %v330 = vpop.f32.mrf.mxu0
  %331 = vdwg.mxu0
  %v332 = vadd.f32 %v19, %v329
  %333 = vst [vmem:[%s3] sm:$0xff] %v332
  // Predicated region
  $region18: #{adamoco_forward.4} parent=0 // pred_check
    %p334 = pneg %p14
  $region19: #{adamoco_forward.4} parent=0 // pred_check_branch
    %336 = sbr.rel (%p334) target = $region21
  $region20: #{adamoco_forward.4} parent=0 // pred_region
    %v337 = vld [vmem:[%s3] sm:$0xff]
    %v338 = vld [vmem:[%s2] sm:$0x1]
    %v340 = vperm.slane %v338, 0
    %v342 = vadd.f32 %v337, %v340
    %v343 = vmul.f32 %v342, %v342
    %344 = vadd.xlane.f32.xlu0 %v343
    %v345 = vpop.xlane.xlu0 %344
    %v346 = vmax.f32 %v345, 1e-24
    %v347 = vrsqrt.pop %v346
    %v348 = vmul.f32 %v347, %v346
    %v349 = vmul.f32 %v348, %v347
    %v350 = vmul.f32 0.5, %v349
    %v351 = vsub.f32 1.5, %v350
    %v352 = vmul.f32 %v347, %v351
    %vm353 = vweird.f32 %v346
    %vm354 = vweird.f32 %v347
    %vm355 = vmor %vm353, %vm354
    %v356 = vsel %vm355, %v347, %v352
    %v357 = vmul.f32 %v342, %v356
    %358 = vst [vmem:[%s3] sm:$0xff] %v357
  $region21: #{adamoco_forward.4} parent=0 // pred_fallthru
    _
  // Predicated region
  $region22: #{adamoco_forward.4} parent=0 // pred_check
    _
  $region23: #{adamoco_forward.4} parent=0 // pred_check_branch
    %360 = sbr.rel (0) target = $region25
  $region24: #{adamoco_forward.4} parent=0 // pred_region
    _
  $region25: #{adamoco_forward.4} parent=0 // pred_fallthru
    _
  // Predicated region
  $region26: #{adamoco_forward.4} parent=0 // pred_check
    _
  $region27: #{adamoco_forward.4} parent=0 // pred_check_branch
    %362 = sbr.rel (0) target = $region29
  $region28: #{adamoco_forward.4} parent=0 // pred_region
    _
  $region29: #{adamoco_forward.4} parent=0 // pred_fallthru
    _

// kernel: adamoco_forward.3
$region0: #{adamoco_forward.3}
  #allocation0 [shape = 'u32[]', space=smem, size = 0x4, offset = 0x4, fixed_abs, tag = 'smem constant byte address 0x4 - core index']
  #allocation1 [shape = 'u32[72,128]{1,0:T(1,128)}', space=vmem, size = 0x9000, scoped, tag = 'internal scratch']
  %s0 = inlined_call_operand.vmem [shape: f32[8,1024], index: 0, kind: input, shape index: {}]
  %s1 = inlined_call_operand.vmem [shape: f32[1024,128], index: 1, kind: input, shape index: {}]
  %s2 = inlined_call_operand.vmem [shape: f32[1,128], index: 2, kind: input, shape index: {}]
  %s3 = inlined_call_operand.vmem [shape: f32[128,128], index: 3, kind: input, shape index: {}]
  %s4 = inlined_call_operand.vmem [shape: f32[1,128], index: 4, kind: input, shape index: {}]
  %s5 = inlined_call_operand.vmem [shape: f32[8,128], index: 5, kind: output, shape index: {0}]
  %s6 = inlined_call_operand.vmem [shape: f32[8,128], index: 6, kind: output, shape index: {1}]
  %s7 = inlined_call_operand.vmem [shape: f32[8,128], index: 7, kind: output, shape index: {2}]
  %8 = xla_tuple %s5, %s6, %s7
  %s9 = sld [smem:[#allocation0]]
  $region54: #{adamoco_forward.3} parent=0
    _
  %s11 = ssub.s32 1, %s9
  %s12 = scalar_select 0, %s11, %s9
  // Predicated region
  $region2: #{adamoco_forward.3} parent=0 // pred_check
    _
  $region3: #{adamoco_forward.3} parent=0 // pred_check_branch
    %14 = sbr.rel (0) target = $region5
  $region4: #{adamoco_forward.3} parent=0 // pred_region
    _
  $region5: #{adamoco_forward.3} parent=0 // pred_fallthru
    _
  // Predicated region
  $region6: #{adamoco_forward.3} parent=0 // pred_check
    _
  $region7: #{adamoco_forward.3} parent=0 // pred_check_branch
    %16 = sbr.rel (0) target = $region9
  $region8: #{adamoco_forward.3} parent=0 // pred_region
    _
  $region9: #{adamoco_forward.3} parent=0 // pred_fallthru
    _
  // Predicated region
  $region10: #{adamoco_forward.3} parent=0 // pred_check
    _
  $region11: #{adamoco_forward.3} parent=0 // pred_check_branch
    %18 = sbr.rel (0) target = $region13
  $region12: #{adamoco_forward.3} parent=0 // pred_region
    _
  $region13: #{adamoco_forward.3} parent=0 // pred_fallthru
    _
  // Predicated region
  $region14: #{adamoco_forward.3} parent=0 // pred_check
    _
  $region15: #{adamoco_forward.3} parent=0 // pred_check_branch
    %20 = sbr.rel (0) target = $region17
  $region16: #{adamoco_forward.3} parent=0 // pred_region
    _
  $region17: #{adamoco_forward.3} parent=0 // pred_fallthru
    _
  // Predicated region
  $region18: #{adamoco_forward.3} parent=0 // pred_check
    _
  $region19: #{adamoco_forward.3} parent=0 // pred_check_branch
    %22 = sbr.rel (0) target = $region21
  $region20: #{adamoco_forward.3} parent=0 // pred_region
    _
  $region21: #{adamoco_forward.3} parent=0 // pred_fallthru
    _
  %p23 = scmp.eq.s32.totalorder 0, 0
  // Predicated region
  $region22: #{adamoco_forward.3} parent=0 // pred_check
    %p24 = pneg %p23
  $region23: #{adamoco_forward.3} parent=0 // pred_check_branch
    %26 = sbr.rel (%p24) target = $region25
  $region24: #{adamoco_forward.3} parent=0 // pred_region
    %27 = vst [vmem:[%s5] sm:$0xff] 0.0
  $region25: #{adamoco_forward.3} parent=0 // pred_fallthru
    _
  %v28 = vld [vmem:[%s5] sm:$0xff]
  %v29 = vld [vmem:[%s0] sm:$0xff]
  %v30 = vld [vmem:[%s0 + $0x8] sm:$0xff]
  %v31 = vld [vmem:[%s0 + $0x10] sm:$0xff]
  %v32 = vld [vmem:[%s0 + $0x18] sm:$0xff]
  %v33 = vld [vmem:[%s0 + $0x20] sm:$0xff]
  %v34 = vld [vmem:[%s0 + $0x28] sm:$0xff]
  %v35 = vld [vmem:[%s0 + $0x30] sm:$0xff]
  %v36 = vld [vmem:[%s0 + $0x38] sm:$0xff]
  %v37 = vpack.c.bf16 %v29, %v29
  %v38 = vpack.c.bf16 %v30, %v30
  %v39 = vpack.c.bf16 %v31, %v31
  %v40 = vpack.c.bf16 %v32, %v32
  %v41 = vpack.c.bf16 %v33, %v33
  %v42 = vpack.c.bf16 %v34, %v34
  %v43 = vpack.c.bf16 %v35, %v35
  %v44 = vpack.c.bf16 %v36, %v36
  %v45 = vld [vmem:[%s1] sm:$0xff]
  %v46 = vld [vmem:[%s1 + $0x8] sm:$0xff]
  %v47 = vld [vmem:[%s1 + $0x10] sm:$0xff]
  %v48 = vld [vmem:[%s1 + $0x18] sm:$0xff]
  %v49 = vld [vmem:[%s1 + $0x20] sm:$0xff]
  %v50 = vld [vmem:[%s1 + $0x28] sm:$0xff]
  %v51 = vld [vmem:[%s1 + $0x30] sm:$0xff]
  %v52 = vld [vmem:[%s1 + $0x38] sm:$0xff]
  %v53 = vld [vmem:[%s1 + $0x40] sm:$0xff]
  %v54 = vld [vmem:[%s1 + $0x48] sm:$0xff]
  %v55 = vld [vmem:[%s1 + $0x50] sm:$0xff]
  %v56 = vld [vmem:[%s1 + $0x58] sm:$0xff]
  %v57 = vld [vmem:[%s1 + $0x60] sm:$0xff]
  %v58 = vld [vmem:[%s1 + $0x68] sm:$0xff]
  %v59 = vld [vmem:[%s1 + $0x70] sm:$0xff]
  %v60 = vld [vmem:[%s1 + $0x78] sm:$0xff]
  %v61 = vld [vmem:[%s1 + $0x80] sm:$0xff]
  %v62 = vld [vmem:[%s1 + $0x88] sm:$0xff]
  %v63 = vld [vmem:[%s1 + $0x90] sm:$0xff]
  %v64 = vld [vmem:[%s1 + $0x98] sm:$0xff]
  %v65 = vld [vmem:[%s1 + $0xa0] sm:$0xff]
  %v66 = vld [vmem:[%s1 + $0xa8] sm:$0xff]
  %v67 = vld [vmem:[%s1 + $0xb0] sm:$0xff]
  %v68 = vld [vmem:[%s1 + $0xb8] sm:$0xff]
  %v69 = vld [vmem:[%s1 + $0xc0] sm:$0xff]
  %v70 = vld [vmem:[%s1 + $0xc8] sm:$0xff]
  %v71 = vld [vmem:[%s1 + $0xd0] sm:$0xff]
  %v72 = vld [vmem:[%s1 + $0xd8] sm:$0xff]
  %v73 = vld [vmem:[%s1 + $0xe0] sm:$0xff]
  %v74 = vld [vmem:[%s1 + $0xe8] sm:$0xff]
  %v75 = vld [vmem:[%s1 + $0xf0] sm:$0xff]
  %v76 = vld [vmem:[%s1 + $0xf8] sm:$0xff]
  %v77 = vld [vmem:[%s1 + $0x100] sm:$0xff]
  %v78 = vld [vmem:[%s1 + $0x108] sm:$0xff]
  %v79 = vld [vmem:[%s1 + $0x110] sm:$0xff]
  %v80 = vld [vmem:[%s1 + $0x118] sm:$0xff]
  %v81 = vld [vmem:[%s1 + $0x120] sm:$0xff]
  %v82 = vld [vmem:[%s1 + $0x128] sm:$0xff]
  %v83 = vld [vmem:[%s1 + $0x130] sm:$0xff]
  %v84 = vld [vmem:[%s1 + $0x138] sm:$0xff]
  %v85 = vld [vmem:[%s1 + $0x140] sm:$0xff]
  %v86 = vld [vmem:[%s1 + $0x148] sm:$0xff]
  %v87 = vld [vmem:[%s1 + $0x150] sm:$0xff]
  %v88 = vld [vmem:[%s1 + $0x158] sm:$0xff]
  %v89 = vld [vmem:[%s1 + $0x160] sm:$0xff]
  %v90 = vld [vmem:[%s1 + $0x168] sm:$0xff]
  %v91 = vld [vmem:[%s1 + $0x170] sm:$0xff]
  %v92 = vld [vmem:[%s1 + $0x178] sm:$0xff]
  %v93 = vld [vmem:[%s1 + $0x180] sm:$0xff]
  %v94 = vld [vmem:[%s1 + $0x188] sm:$0xff]
  %v95 = vld [vmem:[%s1 + $0x190] sm:$0xff]
  %v96 = vld [vmem:[%s1 + $0x198] sm:$0xff]
  %v97 = vld [vmem:[%s1 + $0x1a0] sm:$0xff]
  %v98 = vld [vmem:[%s1 + $0x1a8] sm:$0xff]
  %v99 = vld [vmem:[%s1 + $0x1b0] sm:$0xff]
  %v100 = vld [vmem:[%s1 + $0x1b8] sm:$0xff]
  %v101 = vld [vmem:[%s1 + $0x1c0] sm:$0xff]
  %v102 = vld [vmem:[%s1 + $0x1c8] sm:$0xff]
  %v103 = vld [vmem:[%s1 + $0x1d0] sm:$0xff]
  %v104 = vld [vmem:[%s1 + $0x1d8] sm:$0xff]
  %v105 = vld [vmem:[%s1 + $0x1e0] sm:$0xff]
  %v106 = vld [vmem:[%s1 + $0x1e8] sm:$0xff]
  %v107 = vld [vmem:[%s1 + $0x1f0] sm:$0xff]
  %v108 = vld [vmem:[%s1 + $0x1f8] sm:$0xff]
  %v109 = vld [vmem:[%s1 + $0x200] sm:$0xff]
  %v110 = vld [vmem:[%s1 + $0x208] sm:$0xff]
  %v111 = vld [vmem:[%s1 + $0x210] sm:$0xff]
  %v112 = vld [vmem:[%s1 + $0x218] sm:$0xff]
  %v113 = vld [vmem:[%s1 + $0x220] sm:$0xff]
  %v114 = vld [vmem:[%s1 + $0x228] sm:$0xff]
  %v115 = vld [vmem:[%s1 + $0x230] sm:$0xff]
  %v116 = vld [vmem:[%s1 + $0x238] sm:$0xff]
  %v117 = vld [vmem:[%s1 + $0x240] sm:$0xff]
  %v118 = vld [vmem:[%s1 + $0x248] sm:$0xff]
  %v119 = vld [vmem:[%s1 + $0x250] sm:$0xff]
  %v120 = vld [vmem:[%s1 + $0x258] sm:$0xff]
  %v121 = vld [vmem:[%s1 + $0x260] sm:$0xff]
  %v122 = vld [vmem:[%s1 + $0x268] sm:$0xff]
  %v123 = vld [vmem:[%s1 + $0x270] sm:$0xff]
  %v124 = vld [vmem:[%s1 + $0x278] sm:$0xff]
  %v125 = vld [vmem:[%s1 + $0x280] sm:$0xff]
  %v126 = vld [vmem:[%s1 + $0x288] sm:$0xff]
  %v127 = vld [vmem:[%s1 + $0x290] sm:$0xff]
  %v128 = vld [vmem:[%s1 + $0x298] sm:$0xff]
  %v129 = vld [vmem:[%s1 + $0x2a0] sm:$0xff]
  %v130 = vld [vmem:[%s1 + $0x2a8] sm:$0xff]
  %v131 = vld [vmem:[%s1 + $0x2b0] sm:$0xff]
  %v132 = vld [vmem:[%s1 + $0x2b8] sm:$0xff]
  %v133 = vld [vmem:[%s1 + $0x2c0] sm:$0xff]
  %v134 = vld [vmem:[%s1 + $0x2c8] sm:$0xff]
  %v135 = vld [vmem:[%s1 + $0x2d0] sm:$0xff]
  %v136 = vld [vmem:[%s1 + $0x2d8] sm:$0xff]
  %v137 = vld [vmem:[%s1 + $0x2e0] sm:$0xff]
  %v138 = vld [vmem:[%s1 + $0x2e8] sm:$0xff]
  %v139 = vld [vmem:[%s1 + $0x2f0] sm:$0xff]
  %v140 = vld [vmem:[%s1 + $0x2f8] sm:$0xff]
  %v141 = vld [vmem:[%s1 + $0x300] sm:$0xff]
  %v142 = vld [vmem:[%s1 + $0x308] sm:$0xff]
  %v143 = vld [vmem:[%s1 + $0x310] sm:$0xff]
  %v144 = vld [vmem:[%s1 + $0x318] sm:$0xff]
  %v145 = vld [vmem:[%s1 + $0x320] sm:$0xff]
  %v146 = vld [vmem:[%s1 + $0x328] sm:$0xff]
  %v147 = vld [vmem:[%s1 + $0x330] sm:$0xff]
  %v148 = vld [vmem:[%s1 + $0x338] sm:$0xff]
  %v149 = vld [vmem:[%s1 + $0x340] sm:$0xff]
  %v150 = vld [vmem:[%s1 + $0x348] sm:$0xff]
  %v151 = vld [vmem:[%s1 + $0x350] sm:$0xff]
  %v152 = vld [vmem:[%s1 + $0x358] sm:$0xff]
  %v153 = vld [vmem:[%s1 + $0x360] sm:$0xff]
  %v154 = vld [vmem:[%s1 + $0x368] sm:$0xff]
  %v155 = vld [vmem:[%s1 + $0x370] sm:$0xff]
  %v156 = vld [vmem:[%s1 + $0x378] sm:$0xff]
  %v157 = vld [vmem:[%s1 + $0x380] sm:$0xff]
  %v158 = vld [vmem:[%s1 + $0x388] sm:$0xff]
  %v159 = vld [vmem:[%s1 + $0x390] sm:$0xff]
  %v160 = vld [vmem:[%s1 + $0x398] sm:$0xff]
  %v161 = vld [vmem:[%s1 + $0x3a0] sm:$0xff]
  %v162 = vld [vmem:[%s1 + $0x3a8] sm:$0xff]
  %v163 = vld [vmem:[%s1 + $0x3b0] sm:$0xff]
  %v164 = vld [vmem:[%s1 + $0x3b8] sm:$0xff]
  %v165 = vld [vmem:[%s1 + $0x3c0] sm:$0xff]
  %v166 = vld [vmem:[%s1 + $0x3c8] sm:$0xff]
  %v167 = vld [vmem:[%s1 + $0x3d0] sm:$0xff]
  %v168 = vld [vmem:[%s1 + $0x3d8] sm:$0xff]
  %v169 = vld [vmem:[%s1 + $0x3e0] sm:$0xff]
  %v170 = vld [vmem:[%s1 + $0x3e8] sm:$0xff]
  %v171 = vld [vmem:[%s1 + $0x3f0] sm:$0xff]
  %v172 = vld [vmem:[%s1 + $0x3f8] sm:$0xff]
  %v173 = vpack.c.bf16 %v46, %v45
  %v174 = vpack.c.bf16 %v48, %v47
  %v175 = vpack.c.bf16 %v50, %v49
  %v176 = vpack.c.bf16 %v52, %v51
  %v177 = vpack.c.bf16 %v54, %v53
  %v178 = vpack.c.bf16 %v56, %v55
  %v179 = vpack.c.bf16 %v58, %v57
  %v180 = vpack.c.bf16 %v60, %v59
  %v181 = vpack.c.bf16 %v62, %v61
  %v182 = vpack.c.bf16 %v64, %v63
  %v183 = vpack.c.bf16 %v66, %v65
  %v184 = vpack.c.bf16 %v68, %v67
  %v185 = vpack.c.bf16 %v70, %v69
  %v186 = vpack.c.bf16 %v72, %v71
  %v187 = vpack.c.bf16 %v74, %v73
  %v188 = vpack.c.bf16 %v76, %v75
  %v189 = vpack.c.bf16 %v78, %v77
  %v190 = vpack.c.bf16 %v80, %v79
  %v191 = vpack.c.bf16 %v82, %v81
  %v192 = vpack.c.bf16 %v84, %v83
  %v193 = vpack.c.bf16 %v86, %v85
  %v194 = vpack.c.bf16 %v88, %v87
  %v195 = vpack.c.bf16 %v90, %v89
  %v196 = vpack.c.bf16 %v92, %v91
  %v197 = vpack.c.bf16 %v94, %v93
  %v198 = vpack.c.bf16 %v96, %v95
  %v199 = vpack.c.bf16 %v98, %v97
  %v200 = vpack.c.bf16 %v100, %v99
  %v201 = vpack.c.bf16 %v102, %v101
  %v202 = vpack.c.bf16 %v104, %v103
  %v203 = vpack.c.bf16 %v106, %v105
  %v204 = vpack.c.bf16 %v108, %v107
  %v205 = vpack.c.bf16 %v110, %v109
  %v206 = vpack.c.bf16 %v112, %v111
  %v207 = vpack.c.bf16 %v114, %v113
  %v208 = vpack.c.bf16 %v116, %v115
  %v209 = vpack.c.bf16 %v118, %v117
  %v210 = vpack.c.bf16 %v120, %v119
  %v211 = vpack.c.bf16 %v122, %v121
  %v212 = vpack.c.bf16 %v124, %v123
  %v213 = vpack.c.bf16 %v126, %v125
  %v214 = vpack.c.bf16 %v128, %v127
  %v215 = vpack.c.bf16 %v130, %v129
  %v216 = vpack.c.bf16 %v132, %v131
  %v217 = vpack.c.bf16 %v134, %v133
  %v218 = vpack.c.bf16 %v136, %v135
  %v219 = vpack.c.bf16 %v138, %v137
  %v220 = vpack.c.bf16 %v140, %v139
  %v221 = vpack.c.bf16 %v142, %v141
  %v222 = vpack.c.bf16 %v144, %v143
  %v223 = vpack.c.bf16 %v146, %v145
  %v224 = vpack.c.bf16 %v148, %v147
  %v225 = vpack.c.bf16 %v150, %v149
  %v226 = vpack.c.bf16 %v152, %v151
  %v227 = vpack.c.bf16 %v154, %v153
  %v228 = vpack.c.bf16 %v156, %v155
  %v229 = vpack.c.bf16 %v158, %v157
  %v230 = vpack.c.bf16 %v160, %v159
  %v231 = vpack.c.bf16 %v162, %v161
  %v232 = vpack.c.bf16 %v164, %v163
  %v233 = vpack.c.bf16 %v166, %v165
  %v234 = vpack.c.bf16 %v168, %v167
  %v235 = vpack.c.bf16 %v170, %v169
  %v236 = vpack.c.bf16 %v172, %v171
  %237 = vmatpush.bf16.msra.mxu0 %v180
  %238 = vmatpush.bf16.msra.mxu0 %v179
  %239 = vmatpush.bf16.msra.mxu0 %v178
  %240 = vmatpush.bf16.msra.mxu0 %v177
  %241 = vmatpush.bf16.msra.mxu0 %v176
  %242 = vmatpush.bf16.msra.mxu0 %v175
  %243 = vmatpush.bf16.msra.mxu0 %v174
  %244 = vmatpush.bf16.msra.mxu0 %v173
  %245 = vmatmul.bf16.gmra.mxu0 %v37
  %v246 = vpop.f32.mrf.mxu0
  %v247 = vadd.f32 0.0, %v246
  %v248 = vpop.f32.mrf.mxu0
  %249 = vdwg.mxu0
  %250 = vmatpush.bf16.msra.mxu0 %v188
  %251 = vmatpush.bf16.msra.mxu0 %v187
  %252 = vmatpush.bf16.msra.mxu0 %v186
  %253 = vmatpush.bf16.msra.mxu0 %v185
  %254 = vmatpush.bf16.msra.mxu0 %v184
  %255 = vmatpush.bf16.msra.mxu0 %v183
  %256 = vmatpush.bf16.msra.mxu0 %v182
  %257 = vmatpush.bf16.msra.mxu0 %v181
  %258 = vmatmul.bf16.gmra.mxu0 %v38
  %v259 = vpop.f32.mrf.mxu0
  %v260 = vadd.f32 %v247, %v259
  %v261 = vpop.f32.mrf.mxu0
  %262 = vdwg.mxu0
  %263 = vmatpush.bf16.msra.mxu0 %v196
  %264 = vmatpush.bf16.msra.mxu0 %v195
  %265 = vmatpush.bf16.msra.mxu0 %v194
  %266 = vmatpush.bf16.msra.mxu0 %v193
  %267 = vmatpush.bf16.msra.mxu0 %v192
  %268 = vmatpush.bf16.msra.mxu0 %v191
  %269 = vmatpush.bf16.msra.mxu0 %v190
  %270 = vmatpush.bf16.msra.mxu0 %v189
  %271 = vmatmul.bf16.gmra.mxu0 %v39
  %v272 = vpop.f32.mrf.mxu0
  %v273 = vadd.f32 %v260, %v272
  %v274 = vpop.f32.mrf.mxu0
  %275 = vdwg.mxu0
  %276 = vmatpush.bf16.msra.mxu0 %v204
  %277 = vmatpush.bf16.msra.mxu0 %v203
  %278 = vmatpush.bf16.msra.mxu0 %v202
  %279 = vmatpush.bf16.msra.mxu0 %v201
  %280 = vmatpush.bf16.msra.mxu0 %v200
  %281 = vmatpush.bf16.msra.mxu0 %v199
  %282 = vmatpush.bf16.msra.mxu0 %v198
  %283 = vmatpush.bf16.msra.mxu0 %v197
  %284 = vmatmul.bf16.gmra.mxu0 %v40
  %v285 = vpop.f32.mrf.mxu0
  %v286 = vadd.f32 %v273, %v285
  %v287 = vpop.f32.mrf.mxu0
  %288 = vdwg.mxu0
  %289 = vmatpush.bf16.msra.mxu0 %v212
  %290 = vmatpush.bf16.msra.mxu0 %v211
  %291 = vmatpush.bf16.msra.mxu0 %v210
  %292 = vmatpush.bf16.msra.mxu0 %v209
  %293 = vmatpush.bf16.msra.mxu0 %v208
  %294 = vmatpush.bf16.msra.mxu0 %v207
  %295 = vmatpush.bf16.msra.mxu0 %v206
  %296 = vmatpush.bf16.msra.mxu0 %v205
  %297 = vmatmul.bf16.gmra.mxu0 %v41
  %v298 = vpop.f32.mrf.mxu0
  %v299 = vadd.f32 %v286, %v298
  %v300 = vpop.f32.mrf.mxu0
  %301 = vdwg.mxu0
  %302 = vmatpush.bf16.msra.mxu0 %v220
  %303 = vmatpush.bf16.msra.mxu0 %v219
  %304 = vmatpush.bf16.msra.mxu0 %v218
  %305 = vmatpush.bf16.msra.mxu0 %v217
  %306 = vmatpush.bf16.msra.mxu0 %v216
  %307 = vmatpush.bf16.msra.mxu0 %v215
  %308 = vmatpush.bf16.msra.mxu0 %v214
  %309 = vmatpush.bf16.msra.mxu0 %v213
  %310 = vmatmul.bf16.gmra.mxu0 %v42
  %v311 = vpop.f32.mrf.mxu0
  %v312 = vadd.f32 %v299, %v311
  %v313 = vpop.f32.mrf.mxu0
  %314 = vdwg.mxu0
  %315 = vmatpush.bf16.msra.mxu0 %v228
  %316 = vmatpush.bf16.msra.mxu0 %v227
  %317 = vmatpush.bf16.msra.mxu0 %v226
  %318 = vmatpush.bf16.msra.mxu0 %v225
  %319 = vmatpush.bf16.msra.mxu0 %v224
  %320 = vmatpush.bf16.msra.mxu0 %v223
  %321 = vmatpush.bf16.msra.mxu0 %v222
  %322 = vmatpush.bf16.msra.mxu0 %v221
  %323 = vmatmul.bf16.gmra.mxu0 %v43
  %v324 = vpop.f32.mrf.mxu0
  %v325 = vadd.f32 %v312, %v324
  %v326 = vpop.f32.mrf.mxu0
  %327 = vdwg.mxu0
  %328 = vmatpush.bf16.msra.mxu0 %v236
  %329 = vmatpush.bf16.msra.mxu0 %v235
  %330 = vmatpush.bf16.msra.mxu0 %v234
  %331 = vmatpush.bf16.msra.mxu0 %v233
  %332 = vmatpush.bf16.msra.mxu0 %v232
  %333 = vmatpush.bf16.msra.mxu0 %v231
  %334 = vmatpush.bf16.msra.mxu0 %v230
  %335 = vmatpush.bf16.msra.mxu0 %v229
  %336 = vmatmul.bf16.gmra.mxu0 %v44
  %v337 = vpop.f32.mrf.mxu0
  %v338 = vadd.f32 %v325, %v337
  %v339 = vpop.f32.mrf.mxu0
  %340 = vdwg.mxu0
  %v341 = vadd.f32 %v28, %v338
  %342 = vst [vmem:[%s5] sm:$0xff] %v341
  // Predicated region
  $region26: #{adamoco_forward.3} parent=0 // pred_check
    %p343 = pneg %p23
  $region27: #{adamoco_forward.3} parent=0 // pred_check_branch
    %345 = sbr.rel (%p343) target = $region29
  $region28: #{adamoco_forward.3} parent=0 // pred_region
    %v346 = vld [vmem:[%s5] sm:$0xff]
    %v347 = vld [vmem:[%s2] sm:$0x1]
    %v349 = vperm.slane %v347, 0
    %v351 = vadd.f32 %v346, %v349
    %352 = vst [vmem:[%s5] sm:$0xff] %v351
    %v353 = vpack.c.bf16 %v351, %v351
    %v354 = vld [vmem:[%s3] sm:$0xff]
    %v355 = vld [vmem:[%s3 + $0x8] sm:$0xff]
    %v356 = vld [vmem:[%s3 + $0x10] sm:$0xff]
    %v357 = vld [vmem:[%s3 + $0x18] sm:$0xff]
    %v358 = vld [vmem:[%s3 + $0x20] sm:$0xff]
    %v359 = vld [vmem:[%s3 + $0x28] sm:$0xff]
    %v360 = vld [vmem:[%s3 + $0x30] sm:$0xff]
    %v361 = vld [vmem:[%s3 + $0x38] sm:$0xff]
    %v362 = vld [vmem:[%s3 + $0x40] sm:$0xff]
    %v363 = vld [vmem:[%s3 + $0x48] sm:$0xff]
    %v364 = vld [vmem:[%s3 + $0x50] sm:$0xff]
    %v365 = vld [vmem:[%s3 + $0x58] sm:$0xff]
    %v366 = vld [vmem:[%s3 + $0x60] sm:$0xff]
    %v367 = vld [vmem:[%s3 + $0x68] sm:$0xff]
    %v368 = vld [vmem:[%s3 + $0x70] sm:$0xff]
    %v369 = vld [vmem:[%s3 + $0x78] sm:$0xff]
    %v370 = vpack.c.bf16 %v355, %v354
    %v371 = vpack.c.bf16 %v357, %v356
    %v372 = vpack.c.bf16 %v359, %v358
    %v373 = vpack.c.bf16 %v361, %v360
    %v374 = vpack.c.bf16 %v363, %v362
    %v375 = vpack.c.bf16 %v365, %v364
    %v376 = vpack.c.bf16 %v367, %v366
    %v377 = vpack.c.bf16 %v369, %v368
    %v378 = vld [vmem:[%s4] sm:$0x1]
    %v380 = vperm.slane %v378, 0
    %382 = vmatpush.bf16.msra.mxu0 %v377
    %383 = vmatpush.bf16.msra.mxu0 %v376
    %384 = vmatpush.bf16.msra.mxu0 %v375
    %385 = vmatpush.bf16.msra.mxu0 %v374
    %386 = vmatpush.bf16.msra.mxu0 %v373
    %387 = vmatpush.bf16.msra.mxu0 %v372
    %388 = vmatpush.bf16.msra.mxu0 %v371
    %389 = vmatpush.bf16.msra.mxu0 %v370
    %390 = vmatmul.bf16.gmra.mxu0 %v353
    %v391 = vpop.f32.mrf.mxu0
    %v392 = vadd.f32 %v380, %v391
    %v393 = vpop.f32.mrf.mxu0
    %394 = vdwg.mxu0
    %395 = vst [vmem:[%s6] sm:$0xff] %v392
    %v396 = vmul.f32 %v351, %v351
    %397 = vadd.xlane.f32.xlu0 %v396
    %v398 = vpop.xlane.xlu0 %397
    %v399 = vmax.f32 %v398, 1e-24
    %v400 = vrsqrt.pop %v399
    %v401 = vmul.f32 %v400, %v399
    %v402 = vmul.f32 %v401, %v400
    %v403 = vmul.f32 0.5, %v402
    %v404 = vsub.f32 1.5, %v403
    %v405 = vmul.f32 %v400, %v404
    %vm406 = vweird.f32 %v399
    %vm407 = vweird.f32 %v400
    %vm408 = vmor %vm406, %vm407
    %v409 = vsel %vm408, %v400, %v405
    %v410 = vmul.f32 %v351, %v409
    %411 = vst [vmem:[%s7] sm:$0xff] %v410
  $region29: #{adamoco_forward.3} parent=0 // pred_fallthru
    _
  // Predicated region
  $region30: #{adamoco_forward.3} parent=0 // pred_check
    _
  $region31: #{adamoco_forward.3} parent=0 // pred_check_branch
    %413 = sbr.rel (0) target = $region33
  $region32: #{adamoco_forward.3} parent=0 // pred_region
    _
  $region33: #{adamoco_forward.3} parent=0 // pred_fallthru
    _
  // Predicated region
  $region34: #{adamoco_forward.3} parent=0 // pred_check
    _
  $region35: #{adamoco_forward.3} parent=0 // pred_check_branch
    %415 = sbr.rel (0) target = $region37
  $region36: #{adamoco_forward.3} parent=0 // pred_region
    _
  $region37: #{adamoco_forward.3} parent=0 // pred_fallthru
    _
  // Predicated region
  $region38: #{adamoco_forward.3} parent=0 // pred_check
    _
  $region39: #{adamoco_forward.3} parent=0 // pred_check_branch
    %417 = sbr.rel (0) target = $region41
  $region40: #{adamoco_forward.3} parent=0 // pred_region
    _
  $region41: #{adamoco_forward.3} parent=0 // pred_fallthru
    _
  // Predicated region
  $region42: #{adamoco_forward.3} parent=0 // pred_check
    _
  $region43: #{adamoco_forward.3} parent=0 // pred_check_branch
    %419 = sbr.rel (0) target = $region45
  $region44: #{adamoco_forward.3} parent=0 // pred_region
    _
  $region45: #{adamoco_forward.3} parent=0 // pred_fallthru
    _
  // Predicated region
  $region46: #{adamoco_forward.3} parent=0 // pred_check
    _
  $region47: #{adamoco_forward.3} parent=0 // pred_check_branch
    %421 = sbr.rel (0) target = $region49
  $region48: #{adamoco_forward.3} parent=0 // pred_region
    _
  $region49: #{adamoco_forward.3} parent=0 // pred_fallthru
    _
  // Predicated region
  $region50: #{adamoco_forward.3} parent=0 // pred_check
    _
  $region51: #{adamoco_forward.3} parent=0 // pred_check_branch
    %423 = sbr.rel (0) target = $region53
  $region52: #{adamoco_forward.3} parent=0 // pred_region
    _
  $region53: #{adamoco_forward.3} parent=0 // pred_fallthru
    _

</llo_original>
